<compile_context>
chip_gen: v5e
topology: v5e:2x2
jax: 0.10.0
libtpu: 0.0.40
codegen_flags: <defaults>
</compile_context>

<pallas_src>
import functools

import jax
import jax.numpy as jnp
from jax.experimental import pallas as pl
from jax.experimental.pallas import tpu as pltpu


def _conv_stats_kernel(g_ref, wall_ref, bxy_ref, wm_ref, bm_ref, mask_ref,
                       y_ref, ssum_ref, ssq_ref, t_ref,
                       *, offsets, crop_src, w_len):
    """One batch element per grid step; all compute is lane-dense over Pvol.

    g_ref    : (1, C, L)       bf16  margin-padded, flattened zero-padded input
    wall_ref : (4Q, S*C)       bf16  combined branch weights (zero-padded slots)
    bxy_ref  : (4Q, 1)         f32   [bx; by; 0; 0]
    wm_ref   : (O, 4Q)         f32   convm 1x1x1 weight
    bm_ref   : (O, 1)          f32   convm bias
    mask_ref : (1, Pvol)       f32   1.0 at interior voxels, 0.0 at halo voxels
    y_ref    : (1, O, D*H*W)   bf16  pre-BN convm output, interior voxels only
    ssum_ref : (1, O, 1)       f32   per-batch masked sum         (BN stats)
    ssq_ref  : (1, O, 1)       f32   per-batch masked sum-of-sq   (BN stats)
    t_ref    : (S*C, Pvol)     bf16  stacked tap slabs (VMEM scratch)
    """
    C = g_ref.shape[1]
    Pvol = mask_ref.shape[-1]

    # Build the stacked tap matrix: every unique tap is a contiguous lane slice
    # of the margin-padded flattened volume (pure static slice, no gather).
    g = g_ref[0]                                   # (C, L)
    for s, off in enumerate(offsets):
        t_ref[s * C:(s + 1) * C, :] = g[:, off:off + Pvol]

    # All four direction branches in a single fat-K matmul (K = S*C).
    z = jnp.dot(wall_ref[...], t_ref[...],
                preferred_element_type=jnp.float32)          # (4Q, Pvol)
    z = jnp.maximum(z + bxy_ref[...], 0.0)                   # bias + ReLU (f32)

    # convm 1x1x1 over the channel concat [xa | xb | xc | xd].
    y = jnp.dot(wm_ref[...], z,
                preferred_element_type=jnp.float32) + bm_ref[...]   # (O, Pvol)

    # BatchNorm3d (training-mode) batch statistics, masked to interior voxels.
    ym = y * mask_ref[...]
    ssum_ref[0] = jnp.sum(ym, axis=-1, keepdims=True)
    ssq_ref[0] = jnp.sum(ym * y, axis=-1, keepdims=True)

    # Fused interior crop: copy the D*H interior rows (each W contiguous lanes)
    # of the padded volume into the flat interior-only output slab.
    yb = y.astype(y_ref.dtype)
    for i, src in enumerate(crop_src):
        y_ref[0, :, i * w_len:(i + 1) * w_len] = yb[:, src:src + w_len]


def _bn_relu_kernel(y_ref, scale_ref, shift_ref, out_ref):
    """BN affine + ReLU, fully lane-dense over the flattened interior volume.

    y_ref    : (1, O, D*H*W) bf16
    scale_ref: (1, O, 1)     f32
    shift_ref: (1, O, 1)     f32
    out_ref  : (1, O, D*H*W) f32
    """
    y = y_ref[0].astype(jnp.float32)                         # (O, DHW)
    out_ref[0] = jnp.maximum(y * scale_ref[0] + shift_ref[0], 0.0)


def init_params(key, in_channels, out_channels):
    C, O = in_channels, out_channels
    Q = C // 4
    ks = jax.random.split(key, 8)
    wx = 0.2 * jax.random.normal(ks[0], (Q, C, 1, 1, 3), jnp.float32)
    bx = 0.1 * jax.random.normal(ks[1], (Q,), jnp.float32)
    wy = 0.2 * jax.random.normal(ks[2], (Q, C, 1, 3, 1), jnp.float32)
    by = 0.1 * jax.random.normal(ks[3], (Q,), jnp.float32)
    anti = jnp.array([[0., 0., 1.], [0., 1., 0.], [1., 0., 0.]], jnp.float32)
    diag = jnp.eye(3, dtype=jnp.float32)
    k1 = jax.random.normal(ks[4], (Q, C, 3, 3, 3), jnp.float32)
    k2 = jax.random.normal(ks[5], (Q, C, 3, 3, 3), jnp.float32)
    kernel_1 = k1 * anti[None, None, None, :, :]
    kernel_2 = k2 * diag[None, None, None, :, :]
    wm = 0.3 * jax.random.normal(ks[6], (O, C, 1, 1, 1), jnp.float32)
    bm = 0.1 * jax.random.normal(ks[7], (O,), jnp.float32)
    return {
        'wx': wx, 'bx': bx, 'wy': wy, 'by': by,
        'kernel_1': kernel_1, 'kernel_2': kernel_2,
        'wm': wm, 'bm': bm,
        'gamma': jnp.ones((O,), jnp.float32),   # BatchNorm3d affine init
        'beta': jnp.zeros((O,), jnp.float32),
    }


def stripe_direction_block(x, params):
    """x: (N, C, D, H, W) float32 (PyTorch NCDHW). Returns (N, O, D, H, W)."""
    N, C, D, H, W = x.shape
    Q = C // 4
    O = params['wm'].shape[0]
    Dp, Hp, Wp = D + 2, H + 2, W + 2
    HpWp = Hp * Wp
    Pvol = Dp * HpWp
    DHW = D * H * W
    M = HpWp + Wp + 1          # margin = max |flattened offset| of any 3x3x3 tap
    L = Pvol + 2 * M

    # ---- glue: zero-pad + flatten (+margin) the input, cast to bf16 ----------
    xp = jnp.pad(x, ((0, 0), (0, 0), (1, 1), (1, 1), (1, 1)))
    g = jnp.pad(xp.reshape(N, C, Pvol), ((0, 0), (0, 0), (M, M)))
    g = g.astype(jnp.bfloat16)                                      # (N, C, L)
    # TODO(synk): for production-sized volumes (e.g. 64^3, C=64) tile the grid
    # over D with a one-plane halo so per-step blocks fit v7x's 64 MiB VMEM.

    # ---- deduplicated tap table + combined zero-padded branch weight ---------
    taps, slot_of = [], {}

    def slot(kd, kh, kw):
        key = (kd, kh, kw)
        if key not in slot_of:
            slot_of[key] = len(taps)
            taps.append(key)
        return slot_of[key]

    convx_slots = [slot(1, 1, kw) for kw in range(3)]
    convy_slots = [slot(1, kh, 1) for kh in range(3)]
    k1_slots = [(kd, i, slot(kd, i, 2 - i)) for kd in range(3) for i in range(3)]
    k2_slots = [(kd, i, slot(kd, i, i)) for kd in range(3) for i in range(3)]
    S = len(taps)                      # 19 unique taps (deduped from 24)
    offsets = tuple(M + (kd - 1) * HpWp + (kh - 1) * Wp + (kw - 1)
                    for (kd, kh, kw) in taps)
    # Interior-row source offsets in the flattened padded volume.
    crop_src = tuple((d0 + 1) * HpWp + (h0 + 1) * Wp + 1
                     for d0 in range(D) for h0 in range(H))

    wall = jnp.zeros((4 * Q, S * C), jnp.float32)
    wx = params['wx'][:, :, 0, 0, :]                 # (Q, C, 3)
    wy = params['wy'][:, :, 0, :, 0]                 # (Q, C, 3)
    for kw, s in enumerate(convx_slots):
        wall = wall.at[0 * Q:1 * Q, s * C:(s + 1) * C].set(wx[:, :, kw])
    for kh, s in enumerate(convy_slots):
        wall = wall.at[1 * Q:2 * Q, s * C:(s + 1) * C].set(wy[:, :, kh])
    for kd, i, s in k1_slots:
        wall = wall.at[2 * Q:3 * Q, s * C:(s + 1) * C].set(
            params['kernel_1'][:, :, kd, i, 2 - i])
    for kd, i, s in k2_slots:
        wall = wall.at[3 * Q:4 * Q, s * C:(s + 1) * C].set(
            params['kernel_2'][:, :, kd, i, i])
    wall = wall.astype(jnp.bfloat16)

    bxy = jnp.concatenate(
        [params['bx'], params['by'], jnp.zeros((2 * Q,), jnp.float32)])[:, None]
    wm = params['wm'][:, :, 0, 0, 0]                 # (O, 4Q)
    bm = params['bm'][:, None]                       # (O, 1)
    mask = jnp.pad(jnp.ones((D, H, W), jnp.float32),
                   ((1, 1), (1, 1), (1, 1))).reshape(1, Pvol)

    kernel = functools.partial(_conv_stats_kernel, offsets=offsets,
                               crop_src=crop_src, w_len=W)
    y, ssum, ssq = pl.pallas_call(
        kernel,
        out_shape=(
            jax.ShapeDtypeStruct((N, O, DHW), jnp.bfloat16),
            jax.ShapeDtypeStruct((N, O, 1), jnp.float32),
            jax.ShapeDtypeStruct((N, O, 1), jnp.float32),
        ),
        grid=(N,),
        in_specs=[
            pl.BlockSpec((1, C, L), lambda n: (n, 0, 0)),
            pl.BlockSpec((4 * Q, S * C), lambda n: (0, 0)),
            pl.BlockSpec((4 * Q, 1), lambda n: (0, 0)),
            pl.BlockSpec((O, 4 * Q), lambda n: (0, 0)),
            pl.BlockSpec((O, 1), lambda n: (0, 0)),
            pl.BlockSpec((1, Pvol), lambda n: (0, 0)),
        ],
        out_specs=(
            pl.BlockSpec((1, O, DHW), lambda n: (n, 0, 0)),
            pl.BlockSpec((1, O, 1), lambda n: (n, 0, 0)),
            pl.BlockSpec((1, O, 1), lambda n: (n, 0, 0)),
        ),
        scratch_shapes=[pltpu.VMEM((S * C, Pvol), jnp.bfloat16)],
        compiler_params=pltpu.CompilerParams(
            dimension_semantics=("parallel",),
            vmem_limit_bytes=64 * 1024 * 1024),
    )(g, wall, bxy, wm, bm, mask)

    # BatchNorm3d with training-mode batch statistics (module default), eps=1e-5.
    # Per-batch partials reduced here in f32 (tiny (N, O) glue).
    # TODO(synk): BatchNorm running-stat updates (a training side effect) are not
    # modeled; they do not affect the forward output.
    count = jnp.float32(N * DHW)
    tot = jnp.sum(ssum[:, :, 0], axis=0)
    tot2 = jnp.sum(ssq[:, :, 0], axis=0)
    mean = tot / count
    var = jnp.maximum(tot2 / count - mean * mean, 0.0)
    scale_v = params['gamma'] / jnp.sqrt(var + 1e-5)
    shift_v = params['beta'] - mean * scale_v
    scale3 = scale_v.reshape(1, O, 1)
    shift3 = shift_v.reshape(1, O, 1)

    out = pl.pallas_call(
        _bn_relu_kernel,
        out_shape=jax.ShapeDtypeStruct((N, O, DHW), jnp.float32),
        grid=(N,),
        in_specs=[
            pl.BlockSpec((1, O, DHW), lambda n: (n, 0, 0)),
            pl.BlockSpec((1, O, 1), lambda n: (0, 0, 0)),
            pl.BlockSpec((1, O, 1), lambda n: (0, 0, 0)),
        ],
        out_specs=pl.BlockSpec((1, O, DHW), lambda n: (n, 0, 0)),
        compiler_params=pltpu.CompilerParams(
            dimension_semantics=("parallel",)),
    )(y, scale3, shift3)

    # Row-major reshape of the HBM array is a free bitcast (no data movement).
    return out.reshape(N, O, D, H, W)


# ---------------- pure-JAX reference (mirrors the PyTorch forward) -----------
def _conv3d_ref(x, w, b, padding):
    out = jax.lax.conv_general_dilated(
        x, w, window_strides=(1, 1, 1),
        padding=[(p, p) for p in padding],
        dimension_numbers=('NCDHW', 'OIDHW', 'NCDHW'))
    if b is not None:
        out = out + b.reshape(1, -1, 1, 1, 1)
    return out


def stripe_direction_block_ref(x, params):
    relu = lambda t: jnp.maximum(t, 0.0)
    xa = relu(_conv3d_ref(x, params['wx'], params['bx'], (0, 0, 1)))
    xb = relu(_conv3d_ref(x, params['wy'], params['by'], (0, 1, 0)))
    xc = relu(_conv3d_ref(x, params['kernel_1'], None, (1, 1, 1)))
    xd = relu(_conv3d_ref(x, params['kernel_2'], None, (1, 1, 1)))
    xcat = jnp.concatenate([xa, xb, xc, xd], axis=1)
    y = _conv3d_ref(xcat, params['wm'], params['bm'], (0, 0, 0))
    mean = jnp.mean(y, axis=(0, 2, 3, 4), keepdims=True)
    var = jnp.var(y, axis=(0, 2, 3, 4), keepdims=True)   # biased (train-mode BN)
    g = params['gamma'].reshape(1, -1, 1, 1, 1)
    b = params['beta'].reshape(1, -1, 1, 1, 1)
    return relu((y - mean) / jnp.sqrt(var + 1e-5) * g + b)


if __name__ == "__main__":
    key = jax.random.PRNGKey(0)
    kx, kp = jax.random.split(key)
    N, C, D, H, W = 2, 8, 4, 8, 8     # in_channels=8 (divisible by 4)
    O = 8                             # out_channels
    x = jax.random.normal(kx, (N, C, D, H, W), dtype=jnp.float32)
    params = init_params(kp, C, O)

    out = jax.jit(stripe_direction_block)(x, params)
    out = jax.block_until_ready(out)

    ref = stripe_direction_block_ref(x, params)
    assert out.shape == (N, O, D, H, W), out.shape
    assert jnp.allclose(out, ref, atol=5e-2, rtol=5e-2), \
        float(jnp.max(jnp.abs(out - ref)))
    print("KERNEL_OK")
</pallas_src>

<mosaic_0001>
module attributes {stable_mosaic.version = 11 : i64} {
  func.func @_conv_stats_kernel(%arg0: i32, %arg1: memref<1x8x822xbf16, #tpu.memory_space<vmem>>, %arg2: memref<8x152xbf16, #tpu.memory_space<vmem>>, %arg3: memref<8x1xf32, #tpu.memory_space<vmem>>, %arg4: memref<8x8xf32, #tpu.memory_space<vmem>>, %arg5: memref<8x1xf32, #tpu.memory_space<vmem>>, %arg6: memref<1x600xf32, #tpu.memory_space<vmem>>, %arg7: memref<1x8x256xbf16, #tpu.memory_space<vmem>>, %arg8: memref<1x8x1xf32, #tpu.memory_space<vmem>>, %arg9: memref<1x8x1xf32, #tpu.memory_space<vmem>>, %arg10: memref<152x600xbf16, #tpu.memory_space<vmem>>) attributes {dimension_semantics = [#tpu.dimension_semantics<parallel>], iteration_bounds = array<i64: 2>, scalar_prefetch = 0 : i64, scratch_operands = 1 : i64, tpu.core_type = #tpu.core_type<tc>, window_params = [{transform_indices = @transform_0, window_bounds = array<i64: 1, 8, 822>}, {pipeline_mode = #tpu.pipeline_mode<synchronous>, transform_indices = @transform_1, window_bounds = array<i64: 8, 152>}, {pipeline_mode = #tpu.pipeline_mode<synchronous>, transform_indices = @transform_2, window_bounds = array<i64: 8, 1>}, {pipeline_mode = #tpu.pipeline_mode<synchronous>, transform_indices = @transform_3, window_bounds = array<i64: 8, 8>}, {pipeline_mode = #tpu.pipeline_mode<synchronous>, transform_indices = @transform_4, window_bounds = array<i64: 8, 1>}, {pipeline_mode = #tpu.pipeline_mode<synchronous>, transform_indices = @transform_5, window_bounds = array<i64: 1, 600>}, {transform_indices = @transform_6, window_bounds = array<i64: 1, 8, 256>}, {transform_indices = @transform_7, window_bounds = array<i64: 1, 8, 1>}, {transform_indices = @transform_8, window_bounds = array<i64: 1, 8, 1>}]} {
    %c0 = arith.constant 0 : index
    %c0_0 = arith.constant 0 : index
    %c0_1 = arith.constant 0 : index
    %0 = vector.load %arg1[%c0, %c0_0, %c0_1] : memref<1x8x822xbf16, #tpu.memory_space<vmem>>, vector<1x8x822xbf16>
    %1 = vector.shape_cast %0 : vector<1x8x822xbf16> to vector<8x822xbf16>
    %2 = vector.extract_strided_slice %1 {offsets = [0, 110], sizes = [8, 600], strides = [1, 1]} : vector<8x822xbf16> to vector<8x600xbf16>
    %c0_2 = arith.constant 0 : index
    %c0_3 = arith.constant 0 : index
    %3 = vector.load %arg10[%c0_2, %c0_3] : memref<152x600xbf16, #tpu.memory_space<vmem>>, vector<8x600xbf16>
    tpu.vector_store %arg10[%c0_2, %c0_3], %2 {strides = array<i32>} : memref<152x600xbf16, #tpu.memory_space<vmem>>, vector<8x600xbf16>,
    %4 = vector.extract_strided_slice %1 {offsets = [0, 111], sizes = [8, 600], strides = [1, 1]} : vector<8x822xbf16> to vector<8x600xbf16>
    %c8 = arith.constant 8 : index
    %c0_4 = arith.constant 0 : index
    %5 = vector.load %arg10[%c8, %c0_4] : memref<152x600xbf16, #tpu.memory_space<vmem>>, vector<8x600xbf16>
    tpu.vector_store %arg10[%c8, %c0_4], %4 {strides = array<i32>} : memref<152x600xbf16, #tpu.memory_space<vmem>>, vector<8x600xbf16>,
    %6 = vector.extract_strided_slice %1 {offsets = [0, 112], sizes = [8, 600], strides = [1, 1]} : vector<8x822xbf16> to vector<8x600xbf16>
    %c16 = arith.constant 16 : index
    %c0_5 = arith.constant 0 : index
    %7 = vector.load %arg10[%c16, %c0_5] : memref<152x600xbf16, #tpu.memory_space<vmem>>, vector<8x600xbf16>
    tpu.vector_store %arg10[%c16, %c0_5], %6 {strides = array<i32>} : memref<152x600xbf16, #tpu.memory_space<vmem>>, vector<8x600xbf16>,
    %8 = vector.extract_strided_slice %1 {offsets = [0, 101], sizes = [8, 600], strides = [1, 1]} : vector<8x822xbf16> to vector<8x600xbf16>
    %c24 = arith.constant 24 : index
    %c0_6 = arith.constant 0 : index
    %9 = vector.load %arg10[%c24, %c0_6] : memref<152x600xbf16, #tpu.memory_space<vmem>>, vector<8x600xbf16>
    tpu.vector_store %arg10[%c24, %c0_6], %8 {strides = array<i32>} : memref<152x600xbf16, #tpu.memory_space<vmem>>, vector<8x600xbf16>,
    %10 = vector.extract_strided_slice %1 {offsets = [0, 121], sizes = [8, 600], strides = [1, 1]} : vector<8x822xbf16> to vector<8x600xbf16>
    %c32 = arith.constant 32 : index
    %c0_7 = arith.constant 0 : index
    %11 = vector.load %arg10[%c32, %c0_7] : memref<152x600xbf16, #tpu.memory_space<vmem>>, vector<8x600xbf16>
    tpu.vector_store %arg10[%c32, %c0_7], %10 {strides = array<i32>} : memref<152x600xbf16, #tpu.memory_space<vmem>>, vector<8x600xbf16>,
    %12 = vector.extract_strided_slice %1 {offsets = [0, 2], sizes = [8, 600], strides = [1, 1]} : vector<8x822xbf16> to vector<8x600xbf16>
    %c40 = arith.constant 40 : index
    %c0_8 = arith.constant 0 : index
    %13 = vector.load %arg10[%c40, %c0_8] : memref<152x600xbf16, #tpu.memory_space<vmem>>, vector<8x600xbf16>
    tpu.vector_store %arg10[%c40, %c0_8], %12 {strides = array<i32>} : memref<152x600xbf16, #tpu.memory_space<vmem>>, vector<8x600xbf16>,
    %14 = vector.extract_strided_slice %1 {offsets = [0, 11], sizes = [8, 600], strides = [1, 1]} : vector<8x822xbf16> to vector<8x600xbf16>
    %c48 = arith.constant 48 : index
    %c0_9 = arith.constant 0 : index
    %15 = vector.load %arg10[%c48, %c0_9] : memref<152x600xbf16, #tpu.memory_space<vmem>>, vector<8x600xbf16>
    tpu.vector_store %arg10[%c48, %c0_9], %14 {strides = array<i32>} : memref<152x600xbf16, #tpu.memory_space<vmem>>, vector<8x600xbf16>,
    %16 = vector.extract_strided_slice %1 {offsets = [0, 20], sizes = [8, 600], strides = [1, 1]} : vector<8x822xbf16> to vector<8x600xbf16>
    %c56 = arith.constant 56 : index
    %c0_10 = arith.constant 0 : index
    %17 = vector.load %arg10[%c56, %c0_10] : memref<152x600xbf16, #tpu.memory_space<vmem>>, vector<8x600xbf16>
    tpu.vector_store %arg10[%c56, %c0_10], %16 {strides = array<i32>} : memref<152x600xbf16, #tpu.memory_space<vmem>>, vector<8x600xbf16>,
    %18 = vector.extract_strided_slice %1 {offsets = [0, 102], sizes = [8, 600], strides = [1, 1]} : vector<8x822xbf16> to vector<8x600xbf16>
    %c64 = arith.constant 64 : index
    %c0_11 = arith.constant 0 : index
    %19 = vector.load %arg10[%c64, %c0_11] : memref<152x600xbf16, #tpu.memory_space<vmem>>, vector<8x600xbf16>
    tpu.vector_store %arg10[%c64, %c0_11], %18 {strides = array<i32>} : memref<152x600xbf16, #tpu.memory_space<vmem>>, vector<8x600xbf16>,
    %20 = vector.extract_strided_slice %1 {offsets = [0, 120], sizes = [8, 600], strides = [1, 1]} : vector<8x822xbf16> to vector<8x600xbf16>
    %c72 = arith.constant 72 : index
    %c0_12 = arith.constant 0 : index
    %21 = vector.load %arg10[%c72, %c0_12] : memref<152x600xbf16, #tpu.memory_space<vmem>>, vector<8x600xbf16>
    tpu.vector_store %arg10[%c72, %c0_12], %20 {strides = array<i32>} : memref<152x600xbf16, #tpu.memory_space<vmem>>, vector<8x600xbf16>,
    %22 = vector.extract_strided_slice %1 {offsets = [0, 202], sizes = [8, 600], strides = [1, 1]} : vector<8x822xbf16> to vector<8x600xbf16>
    %c80 = arith.constant 80 : index
    %c0_13 = arith.constant 0 : index
    %23 = vector.load %arg10[%c80, %c0_13] : memref<152x600xbf16, #tpu.memory_space<vmem>>, vector<8x600xbf16>
    tpu.vector_store %arg10[%c80, %c0_13], %22 {strides = array<i32>} : memref<152x600xbf16, #tpu.memory_space<vmem>>, vector<8x600xbf16>,
    %24 = vector.extract_strided_slice %1 {offsets = [0, 211], sizes = [8, 600], strides = [1, 1]} : vector<8x822xbf16> to vector<8x600xbf16>
    %c88 = arith.constant 88 : index
    %c0_14 = arith.constant 0 : index
    %25 = vector.load %arg10[%c88, %c0_14] : memref<152x600xbf16, #tpu.memory_space<vmem>>, vector<8x600xbf16>
    tpu.vector_store %arg10[%c88, %c0_14], %24 {strides = array<i32>} : memref<152x600xbf16, #tpu.memory_space<vmem>>, vector<8x600xbf16>,
    %26 = vector.extract_strided_slice %1 {offsets = [0, 220], sizes = [8, 600], strides = [1, 1]} : vector<8x822xbf16> to vector<8x600xbf16>
    %c96 = arith.constant 96 : index
    %c0_15 = arith.constant 0 : index
    %27 = vector.load %arg10[%c96, %c0_15] : memref<152x600xbf16, #tpu.memory_space<vmem>>, vector<8x600xbf16>
    tpu.vector_store %arg10[%c96, %c0_15], %26 {strides = array<i32>} : memref<152x600xbf16, #tpu.memory_space<vmem>>, vector<8x600xbf16>,
    %28 = vector.extract_strided_slice %1 {offsets = [0, 0], sizes = [8, 600], strides = [1, 1]} : vector<8x822xbf16> to vector<8x600xbf16>
    %c104 = arith.constant 104 : index
    %c0_16 = arith.constant 0 : index
    %29 = vector.load %arg10[%c104, %c0_16] : memref<152x600xbf16, #tpu.memory_space<vmem>>, vector<8x600xbf16>
    tpu.vector_store %arg10[%c104, %c0_16], %28 {strides = array<i32>} : memref<152x600xbf16, #tpu.memory_space<vmem>>, vector<8x600xbf16>,
    %30 = vector.extract_strided_slice %1 {offsets = [0, 22], sizes = [8, 600], strides = [1, 1]} : vector<8x822xbf16> to vector<8x600xbf16>
    %c112 = arith.constant 112 : index
    %c0_17 = arith.constant 0 : index
    %31 = vector.load %arg10[%c112, %c0_17] : memref<152x600xbf16, #tpu.memory_space<vmem>>, vector<8x600xbf16>
    tpu.vector_store %arg10[%c112, %c0_17], %30 {strides = array<i32>} : memref<152x600xbf16, #tpu.memory_space<vmem>>, vector<8x600xbf16>,
    %32 = vector.extract_strided_slice %1 {offsets = [0, 100], sizes = [8, 600], strides = [1, 1]} : vector<8x822xbf16> to vector<8x600xbf16>
    %c120 = arith.constant 120 : index
    %c0_18 = arith.constant 0 : index
    %33 = vector.load %arg10[%c120, %c0_18] : memref<152x600xbf16, #tpu.memory_space<vmem>>, vector<8x600xbf16>
    tpu.vector_store %arg10[%c120, %c0_18], %32 {strides = array<i32>} : memref<152x600xbf16, #tpu.memory_space<vmem>>, vector<8x600xbf16>,
    %34 = vector.extract_strided_slice %1 {offsets = [0, 122], sizes = [8, 600], strides = [1, 1]} : vector<8x822xbf16> to vector<8x600xbf16>
    %c128 = arith.constant 128 : index
    %c0_19 = arith.constant 0 : index
    %35 = vector.load %arg10[%c128, %c0_19] : memref<152x600xbf16, #tpu.memory_space<vmem>>, vector<8x600xbf16>
    tpu.vector_store %arg10[%c128, %c0_19], %34 {strides = array<i32>} : memref<152x600xbf16, #tpu.memory_space<vmem>>, vector<8x600xbf16>,
    %36 = vector.extract_strided_slice %1 {offsets = [0, 200], sizes = [8, 600], strides = [1, 1]} : vector<8x822xbf16> to vector<8x600xbf16>
    %c136 = arith.constant 136 : index
    %c0_20 = arith.constant 0 : index
    %37 = vector.load %arg10[%c136, %c0_20] : memref<152x600xbf16, #tpu.memory_space<vmem>>, vector<8x600xbf16>
    tpu.vector_store %arg10[%c136, %c0_20], %36 {strides = array<i32>} : memref<152x600xbf16, #tpu.memory_space<vmem>>, vector<8x600xbf16>,
    %38 = vector.extract_strided_slice %1 {offsets = [0, 222], sizes = [8, 600], strides = [1, 1]} : vector<8x822xbf16> to vector<8x600xbf16>
    %c144 = arith.constant 144 : index
    %c0_21 = arith.constant 0 : index
    %39 = vector.load %arg10[%c144, %c0_21] : memref<152x600xbf16, #tpu.memory_space<vmem>>, vector<8x600xbf16>
    tpu.vector_store %arg10[%c144, %c0_21], %38 {strides = array<i32>} : memref<152x600xbf16, #tpu.memory_space<vmem>>, vector<8x600xbf16>,
    %c0_22 = arith.constant 0 : index
    %c0_23 = arith.constant 0 : index
    %40 = vector.load %arg2[%c0_22, %c0_23] : memref<8x152xbf16, #tpu.memory_space<vmem>>, vector<8x152xbf16>
    %c0_24 = arith.constant 0 : index
    %c0_25 = arith.constant 0 : index
    %41 = vector.load %arg10[%c0_24, %c0_25] : memref<152x600xbf16, #tpu.memory_space<vmem>>, vector<152x600xbf16>
    %cst = arith.constant dense<0.000000e+00> : vector<8x600xf32>
    %42 = tpu.matmul %40, %41, %cst {dimension_numbers = #tpu.dot_dimension_numbers<[1], [0], [0], [1], [0, 0, 1, 1], [], []>} : vector<8x152xbf16>, vector<152x600xbf16>, vector<8x600xf32> -> vector<8x600xf32>
    %c0_26 = arith.constant 0 : index
    %c0_27 = arith.constant 0 : index
    %43 = vector.load %arg3[%c0_26, %c0_27] : memref<8x1xf32, #tpu.memory_space<vmem>>, vector<8x1xf32>
    %44 = vector.broadcast %43 : vector<8x1xf32> to vector<8x600xf32>
    %45 = arith.addf %42, %44 : vector<8x600xf32>
    %cst_28 = arith.constant 0.000000e+00 : f32
    %46 = vector.broadcast %cst_28 : f32 to vector<8x600xf32>
    %47 = arith.maximumf %45, %46 : vector<8x600xf32>
    %c0_29 = arith.constant 0 : index
    %c0_30 = arith.constant 0 : index
    %48 = vector.load %arg4[%c0_29, %c0_30] : memref<8x8xf32, #tpu.memory_space<vmem>>, vector<8x8xf32>
    %cst_31 = arith.constant dense<0.000000e+00> : vector<8x600xf32>
    %49 = tpu.matmul %48, %47, %cst_31 {dimension_numbers = #tpu.dot_dimension_numbers<[1], [0], [0], [1], [0, 0, 1, 1], [], []>} : vector<8x8xf32>, vector<8x600xf32>, vector<8x600xf32> -> vector<8x600xf32>
    %c0_32 = arith.constant 0 : index
    %c0_33 = arith.constant 0 : index
    %50 = vector.load %arg5[%c0_32, %c0_33] : memref<8x1xf32, #tpu.memory_space<vmem>>, vector<8x1xf32>
    %51 = vector.broadcast %50 : vector<8x1xf32> to vector<8x600xf32>
    %52 = arith.addf %49, %51 : vector<8x600xf32>
    %c0_34 = arith.constant 0 : index
    %c0_35 = arith.constant 0 : index
    %53 = vector.load %arg6[%c0_34, %c0_35] : memref<1x600xf32, #tpu.memory_space<vmem>>, vector<1x600xf32>
    %54 = vector.broadcast %53 : vector<1x600xf32> to vector<8x600xf32>
    %55 = arith.mulf %52, %54 : vector<8x600xf32>
    %cst_36 = arith.constant dense<0.000000e+00> : vector<8xf32>
    %56 = vector.multi_reduction <add>, %55, %cst_36 [1] : vector<8x600xf32> to vector<8xf32>
    %57 = vector.shape_cast %56 : vector<8xf32> to vector<8x1xf32>
    %c0_37 = arith.constant 0 : index
    %c0_38 = arith.constant 0 : index
    %c0_39 = arith.constant 0 : index
    %58 = vector.load %arg8[%c0_37, %c0_38, %c0_39] : memref<1x8x1xf32, #tpu.memory_space<vmem>>, vector<1x8x1xf32>
    %59 = vector.shape_cast %58 : vector<1x8x1xf32> to vector<8x1xf32>
    %60 = vector.shape_cast %57 : vector<8x1xf32> to vector<1x8x1xf32>
    tpu.vector_store %arg8[%c0_37, %c0_38, %c0_39], %60 {strides = array<i32>} : memref<1x8x1xf32, #tpu.memory_space<vmem>>, vector<1x8x1xf32>,
    %61 = arith.mulf %55, %52 : vector<8x600xf32>
    %cst_40 = arith.constant dense<0.000000e+00> : vector<8xf32>
    %62 = vector.multi_reduction <add>, %61, %cst_40 [1] : vector<8x600xf32> to vector<8xf32>
    %63 = vector.shape_cast %62 : vector<8xf32> to vector<8x1xf32>
    %c0_41 = arith.constant 0 : index
    %c0_42 = arith.constant 0 : index
    %c0_43 = arith.constant 0 : index
    %64 = vector.load %arg9[%c0_41, %c0_42, %c0_43] : memref<1x8x1xf32, #tpu.memory_space<vmem>>, vector<1x8x1xf32>
    %65 = vector.shape_cast %64 : vector<1x8x1xf32> to vector<8x1xf32>
    %66 = vector.shape_cast %63 : vector<8x1xf32> to vector<1x8x1xf32>
    tpu.vector_store %arg9[%c0_41, %c0_42, %c0_43], %66 {strides = array<i32>} : memref<1x8x1xf32, #tpu.memory_space<vmem>>, vector<1x8x1xf32>,
    %67 = arith.truncf %52 : vector<8x600xf32> to vector<8x600xbf16>
    %68 = vector.extract_strided_slice %67 {offsets = [0, 111], sizes = [8, 8], strides = [1, 1]} : vector<8x600xbf16> to vector<8x8xbf16>
    %c0_44 = arith.constant 0 : index
    %c0_45 = arith.constant 0 : index
    %c0_46 = arith.constant 0 : index
    %69 = vector.load %arg7[%c0_44, %c0_45, %c0_46] : memref<1x8x256xbf16, #tpu.memory_space<vmem>>, vector<1x8x8xbf16>
    %70 = vector.shape_cast %69 : vector<1x8x8xbf16> to vector<8x8xbf16>
    %71 = vector.shape_cast %68 : vector<8x8xbf16> to vector<1x8x8xbf16>
    tpu.vector_store %arg7[%c0_44, %c0_45, %c0_46], %71 {strides = array<i32>} : memref<1x8x256xbf16, #tpu.memory_space<vmem>>, vector<1x8x8xbf16>,
    %72 = vector.extract_strided_slice %67 {offsets = [0, 121], sizes = [8, 8], strides = [1, 1]} : vector<8x600xbf16> to vector<8x8xbf16>
    %c0_47 = arith.constant 0 : index
    %c0_48 = arith.constant 0 : index
    %c8_49 = arith.constant 8 : index
    %73 = vector.load %arg7[%c0_47, %c0_48, %c8_49] : memref<1x8x256xbf16, #tpu.memory_space<vmem>>, vector<1x8x8xbf16>
    %74 = vector.shape_cast %73 : vector<1x8x8xbf16> to vector<8x8xbf16>
    %75 = vector.shape_cast %72 : vector<8x8xbf16> to vector<1x8x8xbf16>
    tpu.vector_store %arg7[%c0_47, %c0_48, %c8_49], %75 {strides = array<i32>} : memref<1x8x256xbf16, #tpu.memory_space<vmem>>, vector<1x8x8xbf16>,
    %76 = vector.extract_strided_slice %67 {offsets = [0, 131], sizes = [8, 8], strides = [1, 1]} : vector<8x600xbf16> to vector<8x8xbf16>
    %c0_50 = arith.constant 0 : index
    %c0_51 = arith.constant 0 : index
    %c16_52 = arith.constant 16 : index
    %77 = vector.load %arg7[%c0_50, %c0_51, %c16_52] : memref<1x8x256xbf16, #tpu.memory_space<vmem>>, vector<1x8x8xbf16>
    %78 = vector.shape_cast %77 : vector<1x8x8xbf16> to vector<8x8xbf16>
    %79 = vector.shape_cast %76 : vector<8x8xbf16> to vector<1x8x8xbf16>
    tpu.vector_store %arg7[%c0_50, %c0_51, %c16_52], %79 {strides = array<i32>} : memref<1x8x256xbf16, #tpu.memory_space<vmem>>, vector<1x8x8xbf16>,
    %80 = vector.extract_strided_slice %67 {offsets = [0, 141], sizes = [8, 8], strides = [1, 1]} : vector<8x600xbf16> to vector<8x8xbf16>
    %c0_53 = arith.constant 0 : index
    %c0_54 = arith.constant 0 : index
    %c24_55 = arith.constant 24 : index
    %81 = vector.load %arg7[%c0_53, %c0_54, %c24_55] : memref<1x8x256xbf16, #tpu.memory_space<vmem>>, vector<1x8x8xbf16>
    %82 = vector.shape_cast %81 : vector<1x8x8xbf16> to vector<8x8xbf16>
    %83 = vector.shape_cast %80 : vector<8x8xbf16> to vector<1x8x8xbf16>
    tpu.vector_store %arg7[%c0_53, %c0_54, %c24_55], %83 {strides = array<i32>} : memref<1x8x256xbf16, #tpu.memory_space<vmem>>, vector<1x8x8xbf16>,
    %84 = vector.extract_strided_slice %67 {offsets = [0, 151], sizes = [8, 8], strides = [1, 1]} : vector<8x600xbf16> to vector<8x8xbf16>
    %c0_56 = arith.constant 0 : index
    %c0_57 = arith.constant 0 : index
    %c32_58 = arith.constant 32 : index
    %85 = vector.load %arg7[%c0_56, %c0_57, %c32_58] : memref<1x8x256xbf16, #tpu.memory_space<vmem>>, vector<1x8x8xbf16>
    %86 = vector.shape_cast %85 : vector<1x8x8xbf16> to vector<8x8xbf16>
    %87 = vector.shape_cast %84 : vector<8x8xbf16> to vector<1x8x8xbf16>
    tpu.vector_store %arg7[%c0_56, %c0_57, %c32_58], %87 {strides = array<i32>} : memref<1x8x256xbf16, #tpu.memory_space<vmem>>, vector<1x8x8xbf16>,
    %88 = vector.extract_strided_slice %67 {offsets = [0, 161], sizes = [8, 8], strides = [1, 1]} : vector<8x600xbf16> to vector<8x8xbf16>
    %c0_59 = arith.constant 0 : index
    %c0_60 = arith.constant 0 : index
    %c40_61 = arith.constant 40 : index
    %89 = vector.load %arg7[%c0_59, %c0_60, %c40_61] : memref<1x8x256xbf16, #tpu.memory_space<vmem>>, vector<1x8x8xbf16>
    %90 = vector.shape_cast %89 : vector<1x8x8xbf16> to vector<8x8xbf16>
    %91 = vector.shape_cast %88 : vector<8x8xbf16> to vector<1x8x8xbf16>
    tpu.vector_store %arg7[%c0_59, %c0_60, %c40_61], %91 {strides = array<i32>} : memref<1x8x256xbf16, #tpu.memory_space<vmem>>, vector<1x8x8xbf16>,
    %92 = vector.extract_strided_slice %67 {offsets = [0, 171], sizes = [8, 8], strides = [1, 1]} : vector<8x600xbf16> to vector<8x8xbf16>
    %c0_62 = arith.constant 0 : index
    %c0_63 = arith.constant 0 : index
    %c48_64 = arith.constant 48 : index
    %93 = vector.load %arg7[%c0_62, %c0_63, %c48_64] : memref<1x8x256xbf16, #tpu.memory_space<vmem>>, vector<1x8x8xbf16>
    %94 = vector.shape_cast %93 : vector<1x8x8xbf16> to vector<8x8xbf16>
    %95 = vector.shape_cast %92 : vector<8x8xbf16> to vector<1x8x8xbf16>
    tpu.vector_store %arg7[%c0_62, %c0_63, %c48_64], %95 {strides = array<i32>} : memref<1x8x256xbf16, #tpu.memory_space<vmem>>, vector<1x8x8xbf16>,
    %96 = vector.extract_strided_slice %67 {offsets = [0, 181], sizes = [8, 8], strides = [1, 1]} : vector<8x600xbf16> to vector<8x8xbf16>
    %c0_65 = arith.constant 0 : index
    %c0_66 = arith.constant 0 : index
    %c56_67 = arith.constant 56 : index
    %97 = vector.load %arg7[%c0_65, %c0_66, %c56_67] : memref<1x8x256xbf16, #tpu.memory_space<vmem>>, vector<1x8x8xbf16>
    %98 = vector.shape_cast %97 : vector<1x8x8xbf16> to vector<8x8xbf16>
    %99 = vector.shape_cast %96 : vector<8x8xbf16> to vector<1x8x8xbf16>
    tpu.vector_store %arg7[%c0_65, %c0_66, %c56_67], %99 {strides = array<i32>} : memref<1x8x256xbf16, #tpu.memory_space<vmem>>, vector<1x8x8xbf16>,
    %100 = vector.extract_strided_slice %67 {offsets = [0, 211], sizes = [8, 8], strides = [1, 1]} : vector<8x600xbf16> to vector<8x8xbf16>
    %c0_68 = arith.constant 0 : index
    %c0_69 = arith.constant 0 : index
    %c64_70 = arith.constant 64 : index
    %101 = vector.load %arg7[%c0_68, %c0_69, %c64_70] : memref<1x8x256xbf16, #tpu.memory_space<vmem>>, vector<1x8x8xbf16>
    %102 = vector.shape_cast %101 : vector<1x8x8xbf16> to vector<8x8xbf16>
    %103 = vector.shape_cast %100 : vector<8x8xbf16> to vector<1x8x8xbf16>
    tpu.vector_store %arg7[%c0_68, %c0_69, %c64_70], %103 {strides = array<i32>} : memref<1x8x256xbf16, #tpu.memory_space<vmem>>, vector<1x8x8xbf16>,
    %104 = vector.extract_strided_slice %67 {offsets = [0, 221], sizes = [8, 8], strides = [1, 1]} : vector<8x600xbf16> to vector<8x8xbf16>
    %c0_71 = arith.constant 0 : index
    %c0_72 = arith.constant 0 : index
    %c72_73 = arith.constant 72 : index
    %105 = vector.load %arg7[%c0_71, %c0_72, %c72_73] : memref<1x8x256xbf16, #tpu.memory_space<vmem>>, vector<1x8x8xbf16>
    %106 = vector.shape_cast %105 : vector<1x8x8xbf16> to vector<8x8xbf16>
    %107 = vector.shape_cast %104 : vector<8x8xbf16> to vector<1x8x8xbf16>
    tpu.vector_store %arg7[%c0_71, %c0_72, %c72_73], %107 {strides = array<i32>} : memref<1x8x256xbf16, #tpu.memory_space<vmem>>, vector<1x8x8xbf16>,
    %108 = vector.extract_strided_slice %67 {offsets = [0, 231], sizes = [8, 8], strides = [1, 1]} : vector<8x600xbf16> to vector<8x8xbf16>
    %c0_74 = arith.constant 0 : index
    %c0_75 = arith.constant 0 : index
    %c80_76 = arith.constant 80 : index
    %109 = vector.load %arg7[%c0_74, %c0_75, %c80_76] : memref<1x8x256xbf16, #tpu.memory_space<vmem>>, vector<1x8x8xbf16>
    %110 = vector.shape_cast %109 : vector<1x8x8xbf16> to vector<8x8xbf16>
    %111 = vector.shape_cast %108 : vector<8x8xbf16> to vector<1x8x8xbf16>
    tpu.vector_store %arg7[%c0_74, %c0_75, %c80_76], %111 {strides = array<i32>} : memref<1x8x256xbf16, #tpu.memory_space<vmem>>, vector<1x8x8xbf16>,
    %112 = vector.extract_strided_slice %67 {offsets = [0, 241], sizes = [8, 8], strides = [1, 1]} : vector<8x600xbf16> to vector<8x8xbf16>
    %c0_77 = arith.constant 0 : index
    %c0_78 = arith.constant 0 : index
    %c88_79 = arith.constant 88 : index
    %113 = vector.load %arg7[%c0_77, %c0_78, %c88_79] : memref<1x8x256xbf16, #tpu.memory_space<vmem>>, vector<1x8x8xbf16>
    %114 = vector.shape_cast %113 : vector<1x8x8xbf16> to vector<8x8xbf16>
    %115 = vector.shape_cast %112 : vector<8x8xbf16> to vector<1x8x8xbf16>
    tpu.vector_store %arg7[%c0_77, %c0_78, %c88_79], %115 {strides = array<i32>} : memref<1x8x256xbf16, #tpu.memory_space<vmem>>, vector<1x8x8xbf16>,
    %116 = vector.extract_strided_slice %67 {offsets = [0, 251], sizes = [8, 8], strides = [1, 1]} : vector<8x600xbf16> to vector<8x8xbf16>
    %c0_80 = arith.constant 0 : index
    %c0_81 = arith.constant 0 : index
    %c96_82 = arith.constant 96 : index
    %117 = vector.load %arg7[%c0_80, %c0_81, %c96_82] : memref<1x8x256xbf16, #tpu.memory_space<vmem>>, vector<1x8x8xbf16>
    %118 = vector.shape_cast %117 : vector<1x8x8xbf16> to vector<8x8xbf16>
    %119 = vector.shape_cast %116 : vector<8x8xbf16> to vector<1x8x8xbf16>
    tpu.vector_store %arg7[%c0_80, %c0_81, %c96_82], %119 {strides = array<i32>} : memref<1x8x256xbf16, #tpu.memory_space<vmem>>, vector<1x8x8xbf16>,
    %120 = vector.extract_strided_slice %67 {offsets = [0, 261], sizes = [8, 8], strides = [1, 1]} : vector<8x600xbf16> to vector<8x8xbf16>
    %c0_83 = arith.constant 0 : index
    %c0_84 = arith.constant 0 : index
    %c104_85 = arith.constant 104 : index
    %121 = vector.load %arg7[%c0_83, %c0_84, %c104_85] : memref<1x8x256xbf16, #tpu.memory_space<vmem>>, vector<1x8x8xbf16>
    %122 = vector.shape_cast %121 : vector<1x8x8xbf16> to vector<8x8xbf16>
    %123 = vector.shape_cast %120 : vector<8x8xbf16> to vector<1x8x8xbf16>
    tpu.vector_store %arg7[%c0_83, %c0_84, %c104_85], %123 {strides = array<i32>} : memref<1x8x256xbf16, #tpu.memory_space<vmem>>, vector<1x8x8xbf16>,
    %124 = vector.extract_strided_slice %67 {offsets = [0, 271], sizes = [8, 8], strides = [1, 1]} : vector<8x600xbf16> to vector<8x8xbf16>
    %c0_86 = arith.constant 0 : index
    %c0_87 = arith.constant 0 : index
    %c112_88 = arith.constant 112 : index
    %125 = vector.load %arg7[%c0_86, %c0_87, %c112_88] : memref<1x8x256xbf16, #tpu.memory_space<vmem>>, vector<1x8x8xbf16>
    %126 = vector.shape_cast %125 : vector<1x8x8xbf16> to vector<8x8xbf16>
    %127 = vector.shape_cast %124 : vector<8x8xbf16> to vector<1x8x8xbf16>
    tpu.vector_store %arg7[%c0_86, %c0_87, %c112_88], %127 {strides = array<i32>} : memref<1x8x256xbf16, #tpu.memory_space<vmem>>, vector<1x8x8xbf16>,
    %128 = vector.extract_strided_slice %67 {offsets = [0, 281], sizes = [8, 8], strides = [1, 1]} : vector<8x600xbf16> to vector<8x8xbf16>
    %c0_89 = arith.constant 0 : index
    %c0_90 = arith.constant 0 : index
    %c120_91 = arith.constant 120 : index
    %129 = vector.load %arg7[%c0_89, %c0_90, %c120_91] : memref<1x8x256xbf16, #tpu.memory_space<vmem>>, vector<1x8x8xbf16>
    %130 = vector.shape_cast %129 : vector<1x8x8xbf16> to vector<8x8xbf16>
    %131 = vector.shape_cast %128 : vector<8x8xbf16> to vector<1x8x8xbf16>
    tpu.vector_store %arg7[%c0_89, %c0_90, %c120_91], %131 {strides = array<i32>} : memref<1x8x256xbf16, #tpu.memory_space<vmem>>, vector<1x8x8xbf16>,
    %132 = vector.extract_strided_slice %67 {offsets = [0, 311], sizes = [8, 8], strides = [1, 1]} : vector<8x600xbf16> to vector<8x8xbf16>
    %c0_92 = arith.constant 0 : index
    %c0_93 = arith.constant 0 : index
    %c128_94 = arith.constant 128 : index
    %133 = vector.load %arg7[%c0_92, %c0_93, %c128_94] : memref<1x8x256xbf16, #tpu.memory_space<vmem>>, vector<1x8x8xbf16>
    %134 = vector.shape_cast %133 : vector<1x8x8xbf16> to vector<8x8xbf16>
    %135 = vector.shape_cast %132 : vector<8x8xbf16> to vector<1x8x8xbf16>
    tpu.vector_store %arg7[%c0_92, %c0_93, %c128_94], %135 {strides = array<i32>} : memref<1x8x256xbf16, #tpu.memory_space<vmem>>, vector<1x8x8xbf16>,
    %136 = vector.extract_strided_slice %67 {offsets = [0, 321], sizes = [8, 8], strides = [1, 1]} : vector<8x600xbf16> to vector<8x8xbf16>
    %c0_95 = arith.constant 0 : index
    %c0_96 = arith.constant 0 : index
    %c136_97 = arith.constant 136 : index
    %137 = vector.load %arg7[%c0_95, %c0_96, %c136_97] : memref<1x8x256xbf16, #tpu.memory_space<vmem>>, vector<1x8x8xbf16>
    %138 = vector.shape_cast %137 : vector<1x8x8xbf16> to vector<8x8xbf16>
    %139 = vector.shape_cast %136 : vector<8x8xbf16> to vector<1x8x8xbf16>
    tpu.vector_store %arg7[%c0_95, %c0_96, %c136_97], %139 {strides = array<i32>} : memref<1x8x256xbf16, #tpu.memory_space<vmem>>, vector<1x8x8xbf16>,
    %140 = vector.extract_strided_slice %67 {offsets = [0, 331], sizes = [8, 8], strides = [1, 1]} : vector<8x600xbf16> to vector<8x8xbf16>
    %c0_98 = arith.constant 0 : index
    %c0_99 = arith.constant 0 : index
    %c144_100 = arith.constant 144 : index
    %141 = vector.load %arg7[%c0_98, %c0_99, %c144_100] : memref<1x8x256xbf16, #tpu.memory_space<vmem>>, vector<1x8x8xbf16>
    %142 = vector.shape_cast %141 : vector<1x8x8xbf16> to vector<8x8xbf16>
    %143 = vector.shape_cast %140 : vector<8x8xbf16> to vector<1x8x8xbf16>
    tpu.vector_store %arg7[%c0_98, %c0_99, %c144_100], %143 {strides = array<i32>} : memref<1x8x256xbf16, #tpu.memory_space<vmem>>, vector<1x8x8xbf16>,
    %144 = vector.extract_strided_slice %67 {offsets = [0, 341], sizes = [8, 8], strides = [1, 1]} : vector<8x600xbf16> to vector<8x8xbf16>
    %c0_101 = arith.constant 0 : index
    %c0_102 = arith.constant 0 : index
    %c152 = arith.constant 152 : index
    %145 = vector.load %arg7[%c0_101, %c0_102, %c152] : memref<1x8x256xbf16, #tpu.memory_space<vmem>>, vector<1x8x8xbf16>
    %146 = vector.shape_cast %145 : vector<1x8x8xbf16> to vector<8x8xbf16>
    %147 = vector.shape_cast %144 : vector<8x8xbf16> to vector<1x8x8xbf16>
    tpu.vector_store %arg7[%c0_101, %c0_102, %c152], %147 {strides = array<i32>} : memref<1x8x256xbf16, #tpu.memory_space<vmem>>, vector<1x8x8xbf16>,
    %148 = vector.extract_strided_slice %67 {offsets = [0, 351], sizes = [8, 8], strides = [1, 1]} : vector<8x600xbf16> to vector<8x8xbf16>
    %c0_103 = arith.constant 0 : index
    %c0_104 = arith.constant 0 : index
    %c160 = arith.constant 160 : index
    %149 = vector.load %arg7[%c0_103, %c0_104, %c160] : memref<1x8x256xbf16, #tpu.memory_space<vmem>>, vector<1x8x8xbf16>
    %150 = vector.shape_cast %149 : vector<1x8x8xbf16> to vector<8x8xbf16>
    %151 = vector.shape_cast %148 : vector<8x8xbf16> to vector<1x8x8xbf16>
    tpu.vector_store %arg7[%c0_103, %c0_104, %c160], %151 {strides = array<i32>} : memref<1x8x256xbf16, #tpu.memory_space<vmem>>, vector<1x8x8xbf16>,
    %152 = vector.extract_strided_slice %67 {offsets = [0, 361], sizes = [8, 8], strides = [1, 1]} : vector<8x600xbf16> to vector<8x8xbf16>
    %c0_105 = arith.constant 0 : index
    %c0_106 = arith.constant 0 : index
    %c168 = arith.constant 168 : index
    %153 = vector.load %arg7[%c0_105, %c0_106, %c168] : memref<1x8x256xbf16, #tpu.memory_space<vmem>>, vector<1x8x8xbf16>
    %154 = vector.shape_cast %153 : vector<1x8x8xbf16> to vector<8x8xbf16>
    %155 = vector.shape_cast %152 : vector<8x8xbf16> to vector<1x8x8xbf16>
    tpu.vector_store %arg7[%c0_105, %c0_106, %c168], %155 {strides = array<i32>} : memref<1x8x256xbf16, #tpu.memory_space<vmem>>, vector<1x8x8xbf16>,
    %156 = vector.extract_strided_slice %67 {offsets = [0, 371], sizes = [8, 8], strides = [1, 1]} : vector<8x600xbf16> to vector<8x8xbf16>
    %c0_107 = arith.constant 0 : index
    %c0_108 = arith.constant 0 : index
    %c176 = arith.constant 176 : index
    %157 = vector.load %arg7[%c0_107, %c0_108, %c176] : memref<1x8x256xbf16, #tpu.memory_space<vmem>>, vector<1x8x8xbf16>
    %158 = vector.shape_cast %157 : vector<1x8x8xbf16> to vector<8x8xbf16>
    %159 = vector.shape_cast %156 : vector<8x8xbf16> to vector<1x8x8xbf16>
    tpu.vector_store %arg7[%c0_107, %c0_108, %c176], %159 {strides = array<i32>} : memref<1x8x256xbf16, #tpu.memory_space<vmem>>, vector<1x8x8xbf16>,
    %160 = vector.extract_strided_slice %67 {offsets = [0, 381], sizes = [8, 8], strides = [1, 1]} : vector<8x600xbf16> to vector<8x8xbf16>
    %c0_109 = arith.constant 0 : index
    %c0_110 = arith.constant 0 : index
    %c184 = arith.constant 184 : index
    %161 = vector.load %arg7[%c0_109, %c0_110, %c184] : memref<1x8x256xbf16, #tpu.memory_space<vmem>>, vector<1x8x8xbf16>
    %162 = vector.shape_cast %161 : vector<1x8x8xbf16> to vector<8x8xbf16>
    %163 = vector.shape_cast %160 : vector<8x8xbf16> to vector<1x8x8xbf16>
    tpu.vector_store %arg7[%c0_109, %c0_110, %c184], %163 {strides = array<i32>} : memref<1x8x256xbf16, #tpu.memory_space<vmem>>, vector<1x8x8xbf16>,
    %164 = vector.extract_strided_slice %67 {offsets = [0, 411], sizes = [8, 8], strides = [1, 1]} : vector<8x600xbf16> to vector<8x8xbf16>
    %c0_111 = arith.constant 0 : index
    %c0_112 = arith.constant 0 : index
    %c192 = arith.constant 192 : index
    %165 = vector.load %arg7[%c0_111, %c0_112, %c192] : memref<1x8x256xbf16, #tpu.memory_space<vmem>>, vector<1x8x8xbf16>
    %166 = vector.shape_cast %165 : vector<1x8x8xbf16> to vector<8x8xbf16>
    %167 = vector.shape_cast %164 : vector<8x8xbf16> to vector<1x8x8xbf16>
    tpu.vector_store %arg7[%c0_111, %c0_112, %c192], %167 {strides = array<i32>} : memref<1x8x256xbf16, #tpu.memory_space<vmem>>, vector<1x8x8xbf16>,
    %168 = vector.extract_strided_slice %67 {offsets = [0, 421], sizes = [8, 8], strides = [1, 1]} : vector<8x600xbf16> to vector<8x8xbf16>
    %c0_113 = arith.constant 0 : index
    %c0_114 = arith.constant 0 : index
    %c200 = arith.constant 200 : index
    %169 = vector.load %arg7[%c0_113, %c0_114, %c200] : memref<1x8x256xbf16, #tpu.memory_space<vmem>>, vector<1x8x8xbf16>
    %170 = vector.shape_cast %169 : vector<1x8x8xbf16> to vector<8x8xbf16>
    %171 = vector.shape_cast %168 : vector<8x8xbf16> to vector<1x8x8xbf16>
    tpu.vector_store %arg7[%c0_113, %c0_114, %c200], %171 {strides = array<i32>} : memref<1x8x256xbf16, #tpu.memory_space<vmem>>, vector<1x8x8xbf16>,
    %172 = vector.extract_strided_slice %67 {offsets = [0, 431], sizes = [8, 8], strides = [1, 1]} : vector<8x600xbf16> to vector<8x8xbf16>
    %c0_115 = arith.constant 0 : index
    %c0_116 = arith.constant 0 : index
    %c208 = arith.constant 208 : index
    %173 = vector.load %arg7[%c0_115, %c0_116, %c208] : memref<1x8x256xbf16, #tpu.memory_space<vmem>>, vector<1x8x8xbf16>
    %174 = vector.shape_cast %173 : vector<1x8x8xbf16> to vector<8x8xbf16>
    %175 = vector.shape_cast %172 : vector<8x8xbf16> to vector<1x8x8xbf16>
    tpu.vector_store %arg7[%c0_115, %c0_116, %c208], %175 {strides = array<i32>} : memref<1x8x256xbf16, #tpu.memory_space<vmem>>, vector<1x8x8xbf16>,
    %176 = vector.extract_strided_slice %67 {offsets = [0, 441], sizes = [8, 8], strides = [1, 1]} : vector<8x600xbf16> to vector<8x8xbf16>
    %c0_117 = arith.constant 0 : index
    %c0_118 = arith.constant 0 : index
    %c216 = arith.constant 216 : index
    %177 = vector.load %arg7[%c0_117, %c0_118, %c216] : memref<1x8x256xbf16, #tpu.memory_space<vmem>>, vector<1x8x8xbf16>
    %178 = vector.shape_cast %177 : vector<1x8x8xbf16> to vector<8x8xbf16>
    %179 = vector.shape_cast %176 : vector<8x8xbf16> to vector<1x8x8xbf16>
    tpu.vector_store %arg7[%c0_117, %c0_118, %c216], %179 {strides = array<i32>} : memref<1x8x256xbf16, #tpu.memory_space<vmem>>, vector<1x8x8xbf16>,
    %180 = vector.extract_strided_slice %67 {offsets = [0, 451], sizes = [8, 8], strides = [1, 1]} : vector<8x600xbf16> to vector<8x8xbf16>
    %c0_119 = arith.constant 0 : index
    %c0_120 = arith.constant 0 : index
    %c224 = arith.constant 224 : index
    %181 = vector.load %arg7[%c0_119, %c0_120, %c224] : memref<1x8x256xbf16, #tpu.memory_space<vmem>>, vector<1x8x8xbf16>
    %182 = vector.shape_cast %181 : vector<1x8x8xbf16> to vector<8x8xbf16>
    %183 = vector.shape_cast %180 : vector<8x8xbf16> to vector<1x8x8xbf16>
    tpu.vector_store %arg7[%c0_119, %c0_120, %c224], %183 {strides = array<i32>} : memref<1x8x256xbf16, #tpu.memory_space<vmem>>, vector<1x8x8xbf16>,
    %184 = vector.extract_strided_slice %67 {offsets = [0, 461], sizes = [8, 8], strides = [1, 1]} : vector<8x600xbf16> to vector<8x8xbf16>
    %c0_121 = arith.constant 0 : index
    %c0_122 = arith.constant 0 : index
    %c232 = arith.constant 232 : index
    %185 = vector.load %arg7[%c0_121, %c0_122, %c232] : memref<1x8x256xbf16, #tpu.memory_space<vmem>>, vector<1x8x8xbf16>
    %186 = vector.shape_cast %185 : vector<1x8x8xbf16> to vector<8x8xbf16>
    %187 = vector.shape_cast %184 : vector<8x8xbf16> to vector<1x8x8xbf16>
    tpu.vector_store %arg7[%c0_121, %c0_122, %c232], %187 {strides = array<i32>} : memref<1x8x256xbf16, #tpu.memory_space<vmem>>, vector<1x8x8xbf16>,
    %188 = vector.extract_strided_slice %67 {offsets = [0, 471], sizes = [8, 8], strides = [1, 1]} : vector<8x600xbf16> to vector<8x8xbf16>
    %c0_123 = arith.constant 0 : index
    %c0_124 = arith.constant 0 : index
    %c240 = arith.constant 240 : index
    %189 = vector.load %arg7[%c0_123, %c0_124, %c240] : memref<1x8x256xbf16, #tpu.memory_space<vmem>>, vector<1x8x8xbf16>
    %190 = vector.shape_cast %189 : vector<1x8x8xbf16> to vector<8x8xbf16>
    %191 = vector.shape_cast %188 : vector<8x8xbf16> to vector<1x8x8xbf16>
    tpu.vector_store %arg7[%c0_123, %c0_124, %c240], %191 {strides = array<i32>} : memref<1x8x256xbf16, #tpu.memory_space<vmem>>, vector<1x8x8xbf16>,
    %192 = vector.extract_strided_slice %67 {offsets = [0, 481], sizes = [8, 8], strides = [1, 1]} : vector<8x600xbf16> to vector<8x8xbf16>
    %c0_125 = arith.constant 0 : index
    %c0_126 = arith.constant 0 : index
    %c248 = arith.constant 248 : index
    %193 = vector.load %arg7[%c0_125, %c0_126, %c248] : memref<1x8x256xbf16, #tpu.memory_space<vmem>>, vector<1x8x8xbf16>
    %194 = vector.shape_cast %193 : vector<1x8x8xbf16> to vector<8x8xbf16>
    %195 = vector.shape_cast %192 : vector<8x8xbf16> to vector<1x8x8xbf16>
    tpu.vector_store %arg7[%c0_125, %c0_126, %c248], %195 {strides = array<i32>} : memref<1x8x256xbf16, #tpu.memory_space<vmem>>, vector<1x8x8xbf16>,
    return
  }
  func.func @transform_0(%arg0: i32) -> (i32, i32, i32) {
    %c0_i32 = arith.constant 0 : i32
    %c0_i32_0 = arith.constant 0 : i32
    %c0_i32_1 = arith.constant 0 : i32
    return %arg0, %c0_i32, %c0_i32_0 : i32, i32, i32
  }
  func.func @transform_1(%arg0: i32) -> (i32, i32) {
    %c0_i32 = arith.constant 0 : i32
    %c0_i32_0 = arith.constant 0 : i32
    %c0_i32_1 = arith.constant 0 : i32
    return %c0_i32, %c0_i32_0 : i32, i32
  }
  func.func @transform_2(%arg0: i32) -> (i32, i32) {
    %c0_i32 = arith.constant 0 : i32
    %c0_i32_0 = arith.constant 0 : i32
    %c0_i32_1 = arith.constant 0 : i32
    return %c0_i32, %c0_i32_0 : i32, i32
  }
  func.func @transform_3(%arg0: i32) -> (i32, i32) {
    %c0_i32 = arith.constant 0 : i32
    %c0_i32_0 = arith.constant 0 : i32
    %c0_i32_1 = arith.constant 0 : i32
    return %c0_i32, %c0_i32_0 : i32, i32
  }
  func.func @transform_4(%arg0: i32) -> (i32, i32) {
    %c0_i32 = arith.constant 0 : i32
    %c0_i32_0 = arith.constant 0 : i32
    %c0_i32_1 = arith.constant 0 : i32
    return %c0_i32, %c0_i32_0 : i32, i32
  }
  func.func @transform_5(%arg0: i32) -> (i32, i32) {
    %c0_i32 = arith.constant 0 : i32
    %c0_i32_0 = arith.constant 0 : i32
    %c0_i32_1 = arith.constant 0 : i32
    return %c0_i32, %c0_i32_0 : i32, i32
  }
  func.func @transform_6(%arg0: i32) -> (i32, i32, i32) {
    %c0_i32 = arith.constant 0 : i32
    %c0_i32_0 = arith.constant 0 : i32
    %c0_i32_1 = arith.constant 0 : i32
    return %arg0, %c0_i32, %c0_i32_0 : i32, i32, i32
  }
  func.func @transform_7(%arg0: i32) -> (i32, i32, i32) {
    %c0_i32 = arith.constant 0 : i32
    %c0_i32_0 = arith.constant 0 : i32
    %c0_i32_1 = arith.constant 0 : i32
    return %arg0, %c0_i32, %c0_i32_0 : i32, i32, i32
  }
  func.func @transform_8(%arg0: i32) -> (i32, i32, i32) {
    %c0_i32 = arith.constant 0 : i32
    %c0_i32_0 = arith.constant 0 : i32
    %c0_i32_1 = arith.constant 0 : i32
    return %arg0, %c0_i32, %c0_i32_0 : i32, i32, i32
  }
}

module attributes {stable_mosaic.version = 11 : i64} {
  func.func @_bn_relu_kernel(%arg0: i32, %arg1: memref<1x8x256xbf16, #tpu.memory_space<vmem>>, %arg2: memref<1x8x1xf32, #tpu.memory_space<vmem>>, %arg3: memref<1x8x1xf32, #tpu.memory_space<vmem>>, %arg4: memref<1x8x256xf32, #tpu.memory_space<vmem>>) attributes {dimension_semantics = [#tpu.dimension_semantics<parallel>], iteration_bounds = array<i64: 2>, scalar_prefetch = 0 : i64, scratch_operands = 0 : i64, tpu.core_type = #tpu.core_type<tc>, window_params = [{transform_indices = @transform_0, window_bounds = array<i64: 1, 8, 256>}, {pipeline_mode = #tpu.pipeline_mode<synchronous>, transform_indices = @transform_1, window_bounds = array<i64: 1, 8, 1>}, {pipeline_mode = #tpu.pipeline_mode<synchronous>, transform_indices = @transform_2, window_bounds = array<i64: 1, 8, 1>}, {transform_indices = @transform_3, window_bounds = array<i64: 1, 8, 256>}]} {
    %c0 = arith.constant 0 : index
    %c0_0 = arith.constant 0 : index
    %c0_1 = arith.constant 0 : index
    %0 = vector.load %arg1[%c0, %c0_0, %c0_1] : memref<1x8x256xbf16, #tpu.memory_space<vmem>>, vector<1x8x256xbf16>
    %1 = vector.shape_cast %0 : vector<1x8x256xbf16> to vector<8x256xbf16>
    %2 = arith.extf %1 : vector<8x256xbf16> to vector<8x256xf32>
    %c0_2 = arith.constant 0 : index
    %c0_3 = arith.constant 0 : index
    %c0_4 = arith.constant 0 : index
    %3 = vector.load %arg2[%c0_2, %c0_3, %c0_4] : memref<1x8x1xf32, #tpu.memory_space<vmem>>, vector<1x8x1xf32>
    %4 = vector.shape_cast %3 : vector<1x8x1xf32> to vector<8x1xf32>
    %5 = vector.broadcast %4 : vector<8x1xf32> to vector<8x256xf32>
    %6 = arith.mulf %2, %5 : vector<8x256xf32>
    %c0_5 = arith.constant 0 : index
    %c0_6 = arith.constant 0 : index
    %c0_7 = arith.constant 0 : index
    %7 = vector.load %arg3[%c0_5, %c0_6, %c0_7] : memref<1x8x1xf32, #tpu.memory_space<vmem>>, vector<1x8x1xf32>
    %8 = vector.shape_cast %7 : vector<1x8x1xf32> to vector<8x1xf32>
    %9 = vector.broadcast %8 : vector<8x1xf32> to vector<8x256xf32>
    %10 = arith.addf %6, %9 : vector<8x256xf32>
    %cst = arith.constant 0.000000e+00 : f32
    %11 = vector.broadcast %cst : f32 to vector<8x256xf32>
    %12 = arith.maximumf %10, %11 : vector<8x256xf32>
    %c0_8 = arith.constant 0 : index
    %c0_9 = arith.constant 0 : index
    %c0_10 = arith.constant 0 : index
    %13 = vector.load %arg4[%c0_8, %c0_9, %c0_10] : memref<1x8x256xf32, #tpu.memory_space<vmem>>, vector<1x8x256xf32>
    %14 = vector.shape_cast %13 : vector<1x8x256xf32> to vector<8x256xf32>
    %15 = vector.shape_cast %12 : vector<8x256xf32> to vector<1x8x256xf32>
    tpu.vector_store %arg4[%c0_8, %c0_9, %c0_10], %15 {strides = array<i32>} : memref<1x8x256xf32, #tpu.memory_space<vmem>>, vector<1x8x256xf32>,
    return
  }
  func.func @transform_0(%arg0: i32) -> (i32, i32, i32) {
    %c0_i32 = arith.constant 0 : i32
    %c0_i32_0 = arith.constant 0 : i32
    %c0_i32_1 = arith.constant 0 : i32
    return %arg0, %c0_i32, %c0_i32_0 : i32, i32, i32
  }
  func.func @transform_1(%arg0: i32) -> (i32, i32, i32) {
    %c0_i32 = arith.constant 0 : i32
    %c0_i32_0 = arith.constant 0 : i32
    %c0_i32_1 = arith.constant 0 : i32
    %c0_i32_2 = arith.constant 0 : i32
    return %c0_i32, %c0_i32_0, %c0_i32_1 : i32, i32, i32
  }
  func.func @transform_2(%arg0: i32) -> (i32, i32, i32) {
    %c0_i32 = arith.constant 0 : i32
    %c0_i32_0 = arith.constant 0 : i32
    %c0_i32_1 = arith.constant 0 : i32
    %c0_i32_2 = arith.constant 0 : i32
    return %c0_i32, %c0_i32_0, %c0_i32_1 : i32, i32, i32
  }
  func.func @transform_3(%arg0: i32) -> (i32, i32, i32) {
    %c0_i32 = arith.constant 0 : i32
    %c0_i32_0 = arith.constant 0 : i32
    %c0_i32_1 = arith.constant 0 : i32
    return %arg0, %c0_i32, %c0_i32_0 : i32, i32, i32
  }
}

</mosaic_0001>

<llo_original>
// kernel: stripe_direction_block.3
$region0: #{stripe_direction_block.3}
  #allocation0 [shape = 'u32[]', space=smem, size = 0x4, offset = 0x4, fixed_abs, tag = 'smem constant byte address 0x4 - core index']
  #allocation1 [shape = 'u32[72,128]{1,0:T(1,128)}', space=vmem, size = 0x9000, scoped, tag = 'internal scratch']
  %s0 = inlined_call_operand.vmem [shape: bf16[2,8,256], index: 0, kind: input, shape index: {}]
  %s1 = inlined_call_operand.vmem [shape: f32[1,8,1], index: 1, kind: input, shape index: {}]
  %s2 = inlined_call_operand.vmem [shape: f32[1,8,1], index: 2, kind: input, shape index: {}]
  %s3 = inlined_call_operand.vmem [shape: f32[2,8,256], index: 3, kind: output, shape index: {}]
  %s4 = sld [smem:[#allocation0]]
  $region45: #{stripe_direction_block.3} parent=0
    _
  %s6 = ssub.s32 1, %s4
  %s7 = scalar_select 0, %s6, %s4
  loop: start=0, step=1, limit=4
  $region2: #{stripe_direction_block.3} parent=0 // loop_pre_header
    _
  $region3: #{stripe_direction_block.3} parent=0 // loop_header
    %s9 = sphi 0, %s13
    %p10 = scmp.ge.s32.totalorder %s9, 4
    %s19 = sphi 0, %s21
    %s22 = sphi 0, %s19
    %s23 = sphi 0, %s22
    %s39 = sphi 0, %s23
    %s43 = sphi 0, %s43
    %s45 = sphi 0, %s43
    %s46 = sphi 0, %s45
    %s60 = sphi 0, %s46
    %s64 = sphi 0, %s64
    %s66 = sphi 0, %s64
    %s67 = sphi 0, %s66
    %s81 = sphi 0, %s67
    %s87 = sphi 0, %s89
    %s90 = sphi 0, %s87
    %s91 = sphi 0, %s90
    %s107 = sphi 0, %s91
  $region4: #{stripe_direction_block.3} parent=0 // loop_header_branch
    %12 = sbr.rel (%p10) target = $region8
  $region5: #{stripe_direction_block.3} parent=0 // loop_body
    %s14 = ssub.s32 %s9, 1
    %s15 = ssub.s32 %s9, 2
    %s16 = sadd.s32 %s9, 1
    %s17 = ssub.s32 %s9, %s16
    %p18 = scmp.eq.s32.totalorder %s17, 0
    %s20 = sadd.s32 %s19, 1
    %s21 = scalar_select %p18, %s19, %s20
    %p24 = pneg %p18
    %p25 = scmp.eq.s32.totalorder %s9, 1
    %p26 = por %p24, %p25
    %p27 = scmp.ne.s32.totalorder %s19, %s22
    %p28 = scmp.eq.s32.totalorder %s9, 0
    %p29 = por %p27, %p28
    %p30 = scmp.ne.s32.totalorder %s19, %s22
    %p31 = scmp.eq.s32.totalorder %s14, 1
    %p32 = por %p30, %p31
    %p33 = scmp.ne.s32.totalorder %s22, %s23
    %p34 = scmp.eq.s32.totalorder %s14, 0
    %p35 = por %p33, %p34
    %p36 = scmp.ne.s32.totalorder %s22, %s23
    %p37 = scmp.eq.s32.totalorder %s15, 1
    %p38 = por %p36, %p37
    %p40 = scmp.ne.s32.totalorder %s23, %s39
    %p41 = scmp.eq.s32.totalorder %s15, 0
    %p42 = por %p40, %p41
    %s44 = sadd.s32 %s43, 1
    %p47 = scmp.eq.s32.totalorder %s9, 1
    %p48 = scmp.ne.s32.totalorder %s43, %s45
    %p49 = scmp.eq.s32.totalorder %s9, 0
    %p50 = por %p48, %p49
    %p51 = scmp.ne.s32.totalorder %s43, %s45
    %p52 = scmp.eq.s32.totalorder %s14, 1
    %p53 = por %p51, %p52
    %p54 = scmp.ne.s32.totalorder %s45, %s46
    %p55 = scmp.eq.s32.totalorder %s14, 0
    %p56 = por %p54, %p55
    %p57 = scmp.ne.s32.totalorder %s45, %s46
    %p58 = scmp.eq.s32.totalorder %s15, 1
    %p59 = por %p57, %p58
    %p61 = scmp.ne.s32.totalorder %s46, %s60
    %p62 = scmp.eq.s32.totalorder %s15, 0
    %p63 = por %p61, %p62
    %s65 = sadd.s32 %s64, 1
    %p68 = scmp.eq.s32.totalorder %s9, 1
    %p69 = scmp.ne.s32.totalorder %s64, %s66
    %p70 = scmp.eq.s32.totalorder %s9, 0
    %p71 = por %p69, %p70
    %p72 = scmp.ne.s32.totalorder %s64, %s66
    %p73 = scmp.eq.s32.totalorder %s14, 1
    %p74 = por %p72, %p73
    %p75 = scmp.ne.s32.totalorder %s66, %s67
    %p76 = scmp.eq.s32.totalorder %s14, 0
    %p77 = por %p75, %p76
    %p78 = scmp.ne.s32.totalorder %s66, %s67
    %p79 = scmp.eq.s32.totalorder %s15, 1
    %p80 = por %p78, %p79
    %p82 = scmp.ne.s32.totalorder %s67, %s81
    %p83 = scmp.eq.s32.totalorder %s15, 0
    %p84 = por %p82, %p83
    %s85 = ssub.s32 %s9, %s16
    %p86 = scmp.eq.s32.totalorder %s85, 0
    %s88 = sadd.s32 %s87, 1
    %s89 = scalar_select %p86, %s87, %s88
    %p92 = pneg %p86
    %p93 = scmp.eq.s32.totalorder %s9, 1
    %p94 = por %p92, %p93
    %p95 = scmp.ne.s32.totalorder %s87, %s90
    %p96 = scmp.eq.s32.totalorder %s9, 0
    %p97 = por %p95, %p96
    %p98 = scmp.ne.s32.totalorder %s87, %s90
    %p99 = scmp.eq.s32.totalorder %s14, 1
    %p100 = por %p98, %p99
    %p101 = scmp.ne.s32.totalorder %s90, %s91
    %p102 = scmp.eq.s32.totalorder %s14, 0
    %p103 = por %p101, %p102
    %p104 = scmp.ne.s32.totalorder %s90, %s91
    %p105 = scmp.eq.s32.totalorder %s15, 1
    %p106 = por %p104, %p105
    %p108 = scmp.ne.s32.totalorder %s91, %s107
    %p109 = scmp.eq.s32.totalorder %s15, 0
    %p110 = por %p108, %p109
    %p111 = scmp.le.s32.totalorder 1, %s9
    %p112 = scmp.lt.s32.totalorder %s9, 3
    %p113 = pnand %p111, %p112
    %p114 = pneg %p113
    // Predicated region
    $region9: #{stripe_direction_block.3} parent=5 // pred_check
      _
    $region10: #{stripe_direction_block.3} parent=5 // pred_check_branch
      %116 = sbr.rel (%p113) target = $region12
    $region11: #{stripe_direction_block.3} parent=5 // pred_region
      %s117 = ssub.s32 %s9, 1
      // Predicated region
      $region13: #{stripe_direction_block.3} parent=11 // pred_check
        %p118 = pneg %p56
      $region14: #{stripe_direction_block.3} parent=11 // pred_check_branch
        %120 = sbr.rel (%p118) target = $region16
      $region15: #{stripe_direction_block.3} parent=11 // pred_region
        _
      $region16: #{stripe_direction_block.3} parent=11 // pred_fallthru
        _
      // Predicated region
      $region17: #{stripe_direction_block.3} parent=11 // pred_check
        %p121 = pneg %p77
      $region18: #{stripe_direction_block.3} parent=11 // pred_check_branch
        %123 = sbr.rel (%p121) target = $region20
      $region19: #{stripe_direction_block.3} parent=11 // pred_region
        _
      $region20: #{stripe_direction_block.3} parent=11 // pred_fallthru
        _
    $region12: #{stripe_direction_block.3} parent=5 // pred_fallthru
      _
    %p124 = scmp.lt.s32.totalorder %s9, 2
    // Predicated region
    $region21: #{stripe_direction_block.3} parent=5 // pred_check
      %p125 = pneg %p124
    $region22: #{stripe_direction_block.3} parent=5 // pred_check_branch
      %127 = sbr.rel (%p125) target = $region24
    $region23: #{stripe_direction_block.3} parent=5 // pred_region
      // Predicated region
      $region25: #{stripe_direction_block.3} parent=23 // pred_check
        %p128 = pneg %p29
      $region26: #{stripe_direction_block.3} parent=23 // pred_check_branch
        %130 = sbr.rel (%p128) target = $region28
      $region27: #{stripe_direction_block.3} parent=23 // pred_region
        %p131 = scmp.lt.s32.totalorder %s9, 1
        %s132 = scalar_select %p131, %s9, 1
        %s133 = smul.addr %s132, 2
        %s134 = smul.addr %s133, 4
        %s135 = scalar_lea.vmem %s0, %s134
      $region28: #{stripe_direction_block.3} parent=23 // pred_fallthru
        _
    $region24: #{stripe_direction_block.3} parent=5 // pred_fallthru
      _
    %p136 = scmp.le.s32.totalorder 1, %s9
    %p137 = scmp.lt.s32.totalorder %s9, 3
    %p138 = pnand %p136, %p137
    %p139 = pneg %p138
    // Predicated region
    $region29: #{stripe_direction_block.3} parent=5 // pred_check
      _
    $region30: #{stripe_direction_block.3} parent=5 // pred_check_branch
      %141 = sbr.rel (%p138) target = $region32
    $region31: #{stripe_direction_block.3} parent=5 // pred_region
      %s142 = ssub.s32 %s9, 1
      %p143 = scmp.lt.s32.totalorder %s14, 1
      %s144 = scalar_select %p143, %s14, 1
      %s145 = smul.addr %s144, 2
      %s146 = smul.addr %s145, 4
      %s147 = scalar_lea.vmem %s0, %s146
      %p148 = pneg %p35
      %p149 = pneg %p32
      %p150 = pneg %p56
      %p151 = pneg %p53
      %p152 = pneg %p77
      %p153 = pneg %p74
      %p154 = pneg %p103
      %p155 = pneg %p100
      %p156 = scmp.lt.s32.totalorder %s14, 1
      %s157 = scalar_select %p156, %s14, 1
      %s158 = smul.addr %s157, 2
      %s159 = smul.addr %s158, 8
      %s160 = scalar_lea.vmem %s3, %s159
      %p161 = scmp.lt.s32.totalorder %s14, 1
      %s162 = scalar_select %p161, %s14, 1
      %s163 = smul.addr %s162, 2
      %s164 = smul.addr %s163, 4
      %s165 = scalar_lea.vmem %s0, %s164
      %p166 = scmp.lt.s32.totalorder %s14, 1
      %s167 = scalar_select %p166, %s14, 1
      %s168 = smul.addr %s167, 2
      %s169 = smul.addr %s168, 8
      %s170 = scalar_lea.vmem %s3, %s169
      %v171 = vld [vmem:[%s165] sm:$0xff]
      %v172 = vunpack.c.l.bf16 %v171
      %v173 = vunpack.c.h.bf16 %v171
      %v174 = vld [vmem:[%s1] sm:$0xff]
      %176 = vset.pattern.permute.xlu0 0
      %177 = vperm.xlu0 %176, %v174
      %v178 = vpop.permute.xlu0 %177
      %v180 = vmul.f32 %v172, %v178
      %v181 = vmul.f32 %v173, %v178
      %v182 = vld [vmem:[%s2] sm:$0xff]
      %184 = vset.pattern.permute.xlu0 0
      %185 = vperm.xlu0 %184, %v182
      %v186 = vpop.permute.xlu0 %185
      %v188 = vadd.f32 %v180, %v186
      %v189 = vadd.f32 %v181, %v186
      %v190 = vmax.f32 %v188, 0.0
      %v191 = vmax.f32 %v189, 0.0
      %192 = vst [vmem:[%s170] sm:$0xff] %v190
      %193 = vst [vmem:[%s170 + $0x8] sm:$0xff] %v191
      %p194 = scmp.lt.s32.totalorder %s14, 1
      %s195 = scalar_select %p194, %s14, 1
      %s196 = smul.addr %s195, 2
      %s197 = smul.addr %s196, 8
      %s198 = scalar_lea.vmem %s3, %s197
      // Predicated region
      $region33: #{stripe_direction_block.3} parent=31 // pred_check
        %p199 = pneg %p100
      $region34: #{stripe_direction_block.3} parent=31 // pred_check_branch
        %201 = sbr.rel (%p199) target = $region36
      $region35: #{stripe_direction_block.3} parent=31 // pred_region
        _
      $region36: #{stripe_direction_block.3} parent=31 // pred_fallthru
        _
    $region32: #{stripe_direction_block.3} parent=5 // pred_fallthru
      _
    %p202 = scmp.le.s32.totalorder 2, %s9
    // Predicated region
    $region37: #{stripe_direction_block.3} parent=5 // pred_check
      %p203 = pneg %p202
    $region38: #{stripe_direction_block.3} parent=5 // pred_check_branch
      %205 = sbr.rel (%p203) target = $region40
    $region39: #{stripe_direction_block.3} parent=5 // pred_region
      %s206 = ssub.s32 %s9, 2
      // Predicated region
      $region41: #{stripe_direction_block.3} parent=39 // pred_check
        %p207 = pneg %p106
      $region42: #{stripe_direction_block.3} parent=39 // pred_check_branch
        %209 = sbr.rel (%p207) target = $region44
      $region43: #{stripe_direction_block.3} parent=39 // pred_region
        %p210 = scmp.lt.s32.totalorder %s15, 1
        %s211 = scalar_select %p210, %s15, 1
        %s212 = smul.addr %s211, 2
        %s213 = smul.addr %s212, 8
        %s214 = scalar_lea.vmem %s3, %s213
      $region44: #{stripe_direction_block.3} parent=39 // pred_fallthru
        _
    $region40: #{stripe_direction_block.3} parent=5 // pred_fallthru
      _
  $region6: #{stripe_direction_block.3} parent=0 // loop_footer
    %s13 = sadd.s32 1, %s9
  $region7: #{stripe_direction_block.3} parent=0 // loop_footer_branch
    %8 = sbr.rel target = $region3
  $region8: #{stripe_direction_block.3} parent=0 // loop_exit
    _

// kernel: stripe_direction_block.2
$region0: #{stripe_direction_block.2}
  #allocation0 [shape = 'u32[]', space=smem, size = 0x4, offset = 0x4, fixed_abs, tag = 'smem constant byte address 0x4 - core index']
  #allocation1 [shape = 'u32[72,128]{1,0:T(1,128)}', space=vmem, size = 0x9000, scoped, tag = 'internal scratch']
  #allocation2 [shape = 'bf16[152,600]{1,0:T(8,128)(2,1)}', space=vmem, size = 0x2f800, scoped, tag = 'scratch operand']
  %s0 = inlined_call_operand.vmem [shape: bf16[2,8,822], index: 0, kind: input, shape index: {}]
  %s1 = inlined_call_operand.vmem [shape: bf16[8,152], index: 1, kind: input, shape index: {}]
  %s2 = inlined_call_operand.vmem [shape: f32[8,1], index: 2, kind: input, shape index: {}]
  %s3 = inlined_call_operand.vmem [shape: f32[8,8], index: 3, kind: input, shape index: {}]
  %s4 = inlined_call_operand.vmem [shape: f32[8,1], index: 4, kind: input, shape index: {}]
  %s5 = inlined_call_operand.vmem [shape: f32[1,600], index: 5, kind: input, shape index: {}]
  %s6 = inlined_call_operand.vmem [shape: bf16[2,8,256], index: 6, kind: output, shape index: {0}]
  %s7 = inlined_call_operand.vmem [shape: f32[2,8,1], index: 7, kind: output, shape index: {1}]
  %s8 = inlined_call_operand.vmem [shape: f32[2,8,1], index: 8, kind: output, shape index: {2}]
  %9 = xla_tuple %s6, %s7, %s8
  %s10 = sld [smem:[#allocation0]]
  $region73: #{stripe_direction_block.2} parent=0
    _
  %s12 = ssub.s32 1, %s10
  %s13 = scalar_select 0, %s12, %s10
  loop: start=0, step=1, limit=4
  $region2: #{stripe_direction_block.2} parent=0 // loop_pre_header
    _
  $region3: #{stripe_direction_block.2} parent=0 // loop_header
    %s15 = sphi 0, %s19
    %p16 = scmp.ge.s32.totalorder %s15, 4
    %s25 = sphi 0, %s27
    %s28 = sphi 0, %s25
    %s29 = sphi 0, %s28
    %s45 = sphi 0, %s29
    %s49 = sphi 0, %s49
    %s51 = sphi 0, %s49
    %s52 = sphi 0, %s51
    %s66 = sphi 0, %s52
    %s70 = sphi 0, %s70
    %s72 = sphi 0, %s70
    %s73 = sphi 0, %s72
    %s87 = sphi 0, %s73
    %s91 = sphi 0, %s91
    %s93 = sphi 0, %s91
    %s94 = sphi 0, %s93
    %s108 = sphi 0, %s94
    %s112 = sphi 0, %s112
    %s114 = sphi 0, %s112
    %s115 = sphi 0, %s114
    %s129 = sphi 0, %s115
    %s133 = sphi 0, %s133
    %s135 = sphi 0, %s133
    %s136 = sphi 0, %s135
    %s150 = sphi 0, %s136
    %s156 = sphi 0, %s158
    %s159 = sphi 0, %s156
    %s160 = sphi 0, %s159
    %s176 = sphi 0, %s160
    %s182 = sphi 0, %s184
    %s185 = sphi 0, %s182
    %s186 = sphi 0, %s185
    %s202 = sphi 0, %s186
    %s208 = sphi 0, %s210
    %s211 = sphi 0, %s208
    %s212 = sphi 0, %s211
    %s228 = sphi 0, %s212
  $region4: #{stripe_direction_block.2} parent=0 // loop_header_branch
    %18 = sbr.rel (%p16) target = $region8
  $region5: #{stripe_direction_block.2} parent=0 // loop_body
    %s20 = ssub.s32 %s15, 1
    %s21 = ssub.s32 %s15, 2
    %s22 = sadd.s32 %s15, 1
    %s23 = ssub.s32 %s15, %s22
    %p24 = scmp.eq.s32.totalorder %s23, 0
    %s26 = sadd.s32 %s25, 1
    %s27 = scalar_select %p24, %s25, %s26
    %p30 = pneg %p24
    %p31 = scmp.eq.s32.totalorder %s15, 1
    %p32 = por %p30, %p31
    %p33 = scmp.ne.s32.totalorder %s25, %s28
    %p34 = scmp.eq.s32.totalorder %s15, 0
    %p35 = por %p33, %p34
    %p36 = scmp.ne.s32.totalorder %s25, %s28
    %p37 = scmp.eq.s32.totalorder %s20, 1
    %p38 = por %p36, %p37
    %p39 = scmp.ne.s32.totalorder %s28, %s29
    %p40 = scmp.eq.s32.totalorder %s20, 0
    %p41 = por %p39, %p40
    %p42 = scmp.ne.s32.totalorder %s28, %s29
    %p43 = scmp.eq.s32.totalorder %s21, 1
    %p44 = por %p42, %p43
    %p46 = scmp.ne.s32.totalorder %s29, %s45
    %p47 = scmp.eq.s32.totalorder %s21, 0
    %p48 = por %p46, %p47
    %s50 = sadd.s32 %s49, 1
    %p53 = scmp.eq.s32.totalorder %s15, 1
    %p54 = scmp.ne.s32.totalorder %s49, %s51
    %p55 = scmp.eq.s32.totalorder %s15, 0
    %p56 = por %p54, %p55
    %p57 = scmp.ne.s32.totalorder %s49, %s51
    %p58 = scmp.eq.s32.totalorder %s20, 1
    %p59 = por %p57, %p58
    %p60 = scmp.ne.s32.totalorder %s51, %s52
    %p61 = scmp.eq.s32.totalorder %s20, 0
    %p62 = por %p60, %p61
    %p63 = scmp.ne.s32.totalorder %s51, %s52
    %p64 = scmp.eq.s32.totalorder %s21, 1
    %p65 = por %p63, %p64
    %p67 = scmp.ne.s32.totalorder %s52, %s66
    %p68 = scmp.eq.s32.totalorder %s21, 0
    %p69 = por %p67, %p68
    %s71 = sadd.s32 %s70, 1
    %p74 = scmp.eq.s32.totalorder %s15, 1
    %p75 = scmp.ne.s32.totalorder %s70, %s72
    %p76 = scmp.eq.s32.totalorder %s15, 0
    %p77 = por %p75, %p76
    %p78 = scmp.ne.s32.totalorder %s70, %s72
    %p79 = scmp.eq.s32.totalorder %s20, 1
    %p80 = por %p78, %p79
    %p81 = scmp.ne.s32.totalorder %s72, %s73
    %p82 = scmp.eq.s32.totalorder %s20, 0
    %p83 = por %p81, %p82
    %p84 = scmp.ne.s32.totalorder %s72, %s73
    %p85 = scmp.eq.s32.totalorder %s21, 1
    %p86 = por %p84, %p85
    %p88 = scmp.ne.s32.totalorder %s73, %s87
    %p89 = scmp.eq.s32.totalorder %s21, 0
    %p90 = por %p88, %p89
    %s92 = sadd.s32 %s91, 1
    %p95 = scmp.eq.s32.totalorder %s15, 1
    %p96 = scmp.ne.s32.totalorder %s91, %s93
    %p97 = scmp.eq.s32.totalorder %s15, 0
    %p98 = por %p96, %p97
    %p99 = scmp.ne.s32.totalorder %s91, %s93
    %p100 = scmp.eq.s32.totalorder %s20, 1
    %p101 = por %p99, %p100
    %p102 = scmp.ne.s32.totalorder %s93, %s94
    %p103 = scmp.eq.s32.totalorder %s20, 0
    %p104 = por %p102, %p103
    %p105 = scmp.ne.s32.totalorder %s93, %s94
    %p106 = scmp.eq.s32.totalorder %s21, 1
    %p107 = por %p105, %p106
    %p109 = scmp.ne.s32.totalorder %s94, %s108
    %p110 = scmp.eq.s32.totalorder %s21, 0
    %p111 = por %p109, %p110
    %s113 = sadd.s32 %s112, 1
    %p116 = scmp.eq.s32.totalorder %s15, 1
    %p117 = scmp.ne.s32.totalorder %s112, %s114
    %p118 = scmp.eq.s32.totalorder %s15, 0
    %p119 = por %p117, %p118
    %p120 = scmp.ne.s32.totalorder %s112, %s114
    %p121 = scmp.eq.s32.totalorder %s20, 1
    %p122 = por %p120, %p121
    %p123 = scmp.ne.s32.totalorder %s114, %s115
    %p124 = scmp.eq.s32.totalorder %s20, 0
    %p125 = por %p123, %p124
    %p126 = scmp.ne.s32.totalorder %s114, %s115
    %p127 = scmp.eq.s32.totalorder %s21, 1
    %p128 = por %p126, %p127
    %p130 = scmp.ne.s32.totalorder %s115, %s129
    %p131 = scmp.eq.s32.totalorder %s21, 0
    %p132 = por %p130, %p131
    %s134 = sadd.s32 %s133, 1
    %p137 = scmp.eq.s32.totalorder %s15, 1
    %p138 = scmp.ne.s32.totalorder %s133, %s135
    %p139 = scmp.eq.s32.totalorder %s15, 0
    %p140 = por %p138, %p139
    %p141 = scmp.ne.s32.totalorder %s133, %s135
    %p142 = scmp.eq.s32.totalorder %s20, 1
    %p143 = por %p141, %p142
    %p144 = scmp.ne.s32.totalorder %s135, %s136
    %p145 = scmp.eq.s32.totalorder %s20, 0
    %p146 = por %p144, %p145
    %p147 = scmp.ne.s32.totalorder %s135, %s136
    %p148 = scmp.eq.s32.totalorder %s21, 1
    %p149 = por %p147, %p148
    %p151 = scmp.ne.s32.totalorder %s136, %s150
    %p152 = scmp.eq.s32.totalorder %s21, 0
    %p153 = por %p151, %p152
    %s154 = ssub.s32 %s15, %s22
    %p155 = scmp.eq.s32.totalorder %s154, 0
    %s157 = sadd.s32 %s156, 1
    %s158 = scalar_select %p155, %s156, %s157
    %p161 = pneg %p155
    %p162 = scmp.eq.s32.totalorder %s15, 1
    %p163 = por %p161, %p162
    %p164 = scmp.ne.s32.totalorder %s156, %s159
    %p165 = scmp.eq.s32.totalorder %s15, 0
    %p166 = por %p164, %p165
    %p167 = scmp.ne.s32.totalorder %s156, %s159
    %p168 = scmp.eq.s32.totalorder %s20, 1
    %p169 = por %p167, %p168
    %p170 = scmp.ne.s32.totalorder %s159, %s160
    %p171 = scmp.eq.s32.totalorder %s20, 0
    %p172 = por %p170, %p171
    %p173 = scmp.ne.s32.totalorder %s159, %s160
    %p174 = scmp.eq.s32.totalorder %s21, 1
    %p175 = por %p173, %p174
    %p177 = scmp.ne.s32.totalorder %s160, %s176
    %p178 = scmp.eq.s32.totalorder %s21, 0
    %p179 = por %p177, %p178
    %s180 = ssub.s32 %s15, %s22
    %p181 = scmp.eq.s32.totalorder %s180, 0
    %s183 = sadd.s32 %s182, 1
    %s184 = scalar_select %p181, %s182, %s183
    %p187 = pneg %p181
    %p188 = scmp.eq.s32.totalorder %s15, 1
    %p189 = por %p187, %p188
    %p190 = scmp.ne.s32.totalorder %s182, %s185
    %p191 = scmp.eq.s32.totalorder %s15, 0
    %p192 = por %p190, %p191
    %p193 = scmp.ne.s32.totalorder %s182, %s185
    %p194 = scmp.eq.s32.totalorder %s20, 1
    %p195 = por %p193, %p194
    %p196 = scmp.ne.s32.totalorder %s185, %s186
    %p197 = scmp.eq.s32.totalorder %s20, 0
    %p198 = por %p196, %p197
    %p199 = scmp.ne.s32.totalorder %s185, %s186
    %p200 = scmp.eq.s32.totalorder %s21, 1
    %p201 = por %p199, %p200
    %p203 = scmp.ne.s32.totalorder %s186, %s202
    %p204 = scmp.eq.s32.totalorder %s21, 0
    %p205 = por %p203, %p204
    %s206 = ssub.s32 %s15, %s22
    %p207 = scmp.eq.s32.totalorder %s206, 0
    %s209 = sadd.s32 %s208, 1
    %s210 = scalar_select %p207, %s208, %s209
    %p213 = pneg %p207
    %p214 = scmp.eq.s32.totalorder %s15, 1
    %p215 = por %p213, %p214
    %p216 = scmp.ne.s32.totalorder %s208, %s211
    %p217 = scmp.eq.s32.totalorder %s15, 0
    %p218 = por %p216, %p217
    %p219 = scmp.ne.s32.totalorder %s208, %s211
    %p220 = scmp.eq.s32.totalorder %s20, 1
    %p221 = por %p219, %p220
    %p222 = scmp.ne.s32.totalorder %s211, %s212
    %p223 = scmp.eq.s32.totalorder %s20, 0
    %p224 = por %p222, %p223
    %p225 = scmp.ne.s32.totalorder %s211, %s212
    %p226 = scmp.eq.s32.totalorder %s21, 1
    %p227 = por %p225, %p226
    %p229 = scmp.ne.s32.totalorder %s212, %s228
    %p230 = scmp.eq.s32.totalorder %s21, 0
    %p231 = por %p229, %p230
    %p232 = scmp.le.s32.totalorder 1, %s15
    %p233 = scmp.lt.s32.totalorder %s15, 3
    %p234 = pnand %p232, %p233
    %p235 = pneg %p234
    // Predicated region
    $region9: #{stripe_direction_block.2} parent=5 // pred_check
      _
    $region10: #{stripe_direction_block.2} parent=5 // pred_check_branch
      %237 = sbr.rel (%p234) target = $region12
    $region11: #{stripe_direction_block.2} parent=5 // pred_region
      %s238 = ssub.s32 %s15, 1
      // Predicated region
      $region13: #{stripe_direction_block.2} parent=11 // pred_check
        %p239 = pneg %p62
      $region14: #{stripe_direction_block.2} parent=11 // pred_check_branch
        %241 = sbr.rel (%p239) target = $region16
      $region15: #{stripe_direction_block.2} parent=11 // pred_region
        _
      $region16: #{stripe_direction_block.2} parent=11 // pred_fallthru
        _
      // Predicated region
      $region17: #{stripe_direction_block.2} parent=11 // pred_check
        %p242 = pneg %p83
      $region18: #{stripe_direction_block.2} parent=11 // pred_check_branch
        %244 = sbr.rel (%p242) target = $region20
      $region19: #{stripe_direction_block.2} parent=11 // pred_region
        _
      $region20: #{stripe_direction_block.2} parent=11 // pred_fallthru
        _
      // Predicated region
      $region21: #{stripe_direction_block.2} parent=11 // pred_check
        %p245 = pneg %p104
      $region22: #{stripe_direction_block.2} parent=11 // pred_check_branch
        %247 = sbr.rel (%p245) target = $region24
      $region23: #{stripe_direction_block.2} parent=11 // pred_region
        _
      $region24: #{stripe_direction_block.2} parent=11 // pred_fallthru
        _
      // Predicated region
      $region25: #{stripe_direction_block.2} parent=11 // pred_check
        %p248 = pneg %p125
      $region26: #{stripe_direction_block.2} parent=11 // pred_check_branch
        %250 = sbr.rel (%p248) target = $region28
      $region27: #{stripe_direction_block.2} parent=11 // pred_region
        _
      $region28: #{stripe_direction_block.2} parent=11 // pred_fallthru
        _
      // Predicated region
      $region29: #{stripe_direction_block.2} parent=11 // pred_check
        %p251 = pneg %p146
      $region30: #{stripe_direction_block.2} parent=11 // pred_check_branch
        %253 = sbr.rel (%p251) target = $region32
      $region31: #{stripe_direction_block.2} parent=11 // pred_region
        _
      $region32: #{stripe_direction_block.2} parent=11 // pred_fallthru
        _
    $region12: #{stripe_direction_block.2} parent=5 // pred_fallthru
      _
    %p254 = scmp.lt.s32.totalorder %s15, 2
    // Predicated region
    $region33: #{stripe_direction_block.2} parent=5 // pred_check
      %p255 = pneg %p254
    $region34: #{stripe_direction_block.2} parent=5 // pred_check_branch
      %257 = sbr.rel (%p255) target = $region36
    $region35: #{stripe_direction_block.2} parent=5 // pred_region
      // Predicated region
      $region37: #{stripe_direction_block.2} parent=35 // pred_check
        %p258 = pneg %p35
      $region38: #{stripe_direction_block.2} parent=35 // pred_check_branch
        %260 = sbr.rel (%p258) target = $region40
      $region39: #{stripe_direction_block.2} parent=35 // pred_region
        %p261 = scmp.lt.s32.totalorder %s15, 1
        %s262 = scalar_select %p261, %s15, 1
        %s263 = smul.addr %s262, 7
        %s264 = smul.addr %s263, 4
        %s265 = scalar_lea.vmem %s0, %s264
      $region40: #{stripe_direction_block.2} parent=35 // pred_fallthru
        _
    $region36: #{stripe_direction_block.2} parent=5 // pred_fallthru
      _
    %p266 = scmp.le.s32.totalorder 1, %s15
    %p267 = scmp.lt.s32.totalorder %s15, 3
    %p268 = pnand %p266, %p267
    %p269 = pneg %p268
    // Predicated region
    $region41: #{stripe_direction_block.2} parent=5 // pred_check
      _
    $region42: #{stripe_direction_block.2} parent=5 // pred_check_branch
      %271 = sbr.rel (%p268) target = $region44
    $region43: #{stripe_direction_block.2} parent=5 // pred_region
      %s272 = ssub.s32 %s15, 1
      %p273 = scmp.lt.s32.totalorder %s20, 1
      %s274 = scalar_select %p273, %s20, 1
      %s275 = smul.addr %s274, 7
      %s276 = smul.addr %s275, 4
      %s277 = scalar_lea.vmem %s0, %s276
      %p278 = pneg %p41
      %p279 = pneg %p38
      %p280 = pneg %p62
      %p281 = pneg %p59
      %p282 = pneg %p83
      %p283 = pneg %p80
      %p284 = pneg %p104
      %p285 = pneg %p101
      %p286 = pneg %p125
      %p287 = pneg %p122
      %p288 = pneg %p146
      %p289 = pneg %p143
      %p290 = pneg %p172
      %p291 = pneg %p169
      %p292 = scmp.lt.s32.totalorder %s20, 1
      %s293 = scalar_select %p292, %s20, 1
      %s294 = smul.addr %s293, 2
      %s295 = smul.addr %s294, 4
      %s296 = scalar_lea.vmem %s6, %s295
      %p297 = pneg %p198
      %p298 = pneg %p195
      %p299 = scmp.lt.s32.totalorder %s20, 1
      %s300 = scalar_select %p299, %s20, 1
      %s301 = smul.addr %s300, 8
      %s302 = scalar_lea.vmem %s7, %s301
      %p303 = pneg %p224
      %p304 = pneg %p221
      %p305 = scmp.lt.s32.totalorder %s20, 1
      %s306 = scalar_select %p305, %s20, 1
      %s307 = smul.addr %s306, 8
      %s308 = scalar_lea.vmem %s8, %s307
      %p309 = scmp.lt.s32.totalorder %s20, 1
      %s310 = scalar_select %p309, %s20, 1
      %s311 = smul.addr %s310, 7
      %s312 = smul.addr %s311, 4
      %s313 = scalar_lea.vmem %s0, %s312
      %p314 = scmp.lt.s32.totalorder %s20, 1
      %s315 = scalar_select %p314, %s20, 1
      %s316 = smul.addr %s315, 2
      %s317 = smul.addr %s316, 4
      %s318 = scalar_lea.vmem %s6, %s317
      %p319 = scmp.lt.s32.totalorder %s20, 1
      %s320 = scalar_select %p319, %s20, 1
      %s321 = smul.addr %s320, 8
      %s322 = scalar_lea.vmem %s7, %s321
      %p323 = scmp.lt.s32.totalorder %s20, 1
      %s324 = scalar_select %p323, %s20, 1
      %s325 = smul.addr %s324, 8
      %s326 = scalar_lea.vmem %s8, %s325
      %v328 = vld [vmem:[%s313] sm:$0xff]
      %v329 = vld [vmem:[%s313 + $0x8] sm:$0xff]
      %v330 = vld [vmem:[%s313 + $0x10] sm:$0xff]
      %v331 = vld [vmem:[%s313 + $0x18] sm:$0xf]
      %335 = vrot.lane.b32.xlu0 %v328, 18
      %v336 = vpop.permute.xlu0 %335
      %337 = vrot.lane.b32.xlu0 %v329, 18
      %v338 = vpop.permute.xlu0 %337
      %339 = vrot.lane.b32.xlu0 %v330, 18
      %v340 = vpop.permute.xlu0 %339
      %v341 = vrot.slane %v336, 4
      %v342 = vrot.slane %v338, 4
      %v343 = vrot.slane %v340, 4
      %vm344 = vcmask 1043456
      %v345 = vsel %vm344, %v341, %v342
      %vm346 = vcmask 146432
      %v347 = vsel %vm346, %v336, %v345
      %v348 = vsel %vm344, %v342, %v343
      %v349 = vsel %vm346, %v338, %v348
      %v350 = vsel %vm346, %v340, %v343
      %354 = vst [vmem:[#allocation2] sm:$0xff] %v347
      %355 = vst [vmem:[#allocation2 + $0x8] sm:$0xff] %v349
      %vm356 = vcmask 715776
      %357 = vst.msk [vmem:[#allocation2 + $0x10] sm:$0xf] %vm356, %v350
      %358 = vrot.lane.b32.xlu0 %v328, 17
      %v359 = vpop.permute.xlu0 %358
      %360 = vrot.lane.b32.xlu0 %v329, 17
      %v361 = vpop.permute.xlu0 %360
      %362 = vrot.lane.b32.xlu0 %v330, 17
      %v363 = vpop.permute.xlu0 %362
      %v364 = vrot.slane %v359, 4
      %v365 = vrot.slane %v361, 4
      %v366 = vrot.slane %v363, 4
      %v367 = vsel %vm344, %v364, %v365
      %vm368 = vcmask 138240
      %v369 = vsel %vm368, %v359, %v367
      %v370 = vsel %vm344, %v365, %v366
      %v371 = vsel %vm368, %v361, %v370
      %v372 = vsel %vm368, %v363, %v366
      %376 = vst [vmem:[#allocation2 + $0x14] sm:$0xff] %v369
      %377 = vst [vmem:[#allocation2 + $0x1c] sm:$0xff] %v371
      %378 = vst.msk [vmem:[#allocation2 + $0x24] sm:$0xf] %vm356, %v372
      %379 = vrot.lane.b32.xlu0 %v328, 16
      %v380 = vpop.permute.xlu0 %379
      %381 = vrot.lane.b32.xlu0 %v329, 16
      %v382 = vpop.permute.xlu0 %381
      %383 = vrot.lane.b32.xlu0 %v330, 16
      %v384 = vpop.permute.xlu0 %383
      %v385 = vrot.slane %v380, 4
      %v386 = vrot.slane %v382, 4
      %v387 = vrot.slane %v384, 4
      %v388 = vsel %vm344, %v385, %v386
      %vm389 = vcmask 130048
      %v390 = vsel %vm389, %v380, %v388
      %v391 = vsel %vm344, %v386, %v387
      %v392 = vsel %vm389, %v382, %v391
      %v393 = vsel %vm389, %v384, %v387
      %397 = vst [vmem:[#allocation2 + $0x28] sm:$0xff] %v390
      %398 = vst [vmem:[#allocation2 + $0x30] sm:$0xff] %v392
      %399 = vst.msk [vmem:[#allocation2 + $0x38] sm:$0xf] %vm356, %v393
      %400 = vrot.lane.b32.xlu0 %v328, 27
      %v401 = vpop.permute.xlu0 %400
      %402 = vrot.lane.b32.xlu0 %v329, 27
      %v403 = vpop.permute.xlu0 %402
      %404 = vrot.lane.b32.xlu0 %v330, 27
      %v405 = vpop.permute.xlu0 %404
      %v406 = vrot.slane %v401, 4
      %v407 = vrot.slane %v403, 4
      %v408 = vrot.slane %v405, 4
      %v409 = vsel %vm344, %v406, %v407
      %vm410 = vcmask 220160
      %v411 = vsel %vm410, %v401, %v409
      %v412 = vsel %vm344, %v407, %v408
      %v413 = vsel %vm410, %v403, %v412
      %v414 = vsel %vm410, %v405, %v408
      %418 = vst [vmem:[#allocation2 + $0x3c] sm:$0xff] %v411
      %419 = vst [vmem:[#allocation2 + $0x44] sm:$0xff] %v413
      %420 = vst.msk [vmem:[#allocation2 + $0x4c] sm:$0xf] %vm356, %v414
      %421 = vrot.lane.b32.xlu0 %v328, 7
      %v422 = vpop.permute.xlu0 %421
      %423 = vrot.lane.b32.xlu0 %v329, 7
      %v424 = vpop.permute.xlu0 %423
      %425 = vrot.lane.b32.xlu0 %v330, 7
      %v426 = vpop.permute.xlu0 %425
      %v427 = vrot.slane %v422, 4
      %v428 = vrot.slane %v424, 4
      %v429 = vrot.slane %v426, 4
      %v430 = vsel %vm344, %v427, %v428
      %vm431 = vcmask 56320
      %v432 = vsel %vm431, %v422, %v430
      %v433 = vsel %vm344, %v428, %v429
      %v434 = vsel %vm431, %v424, %v433
      %v435 = vsel %vm431, %v426, %v429
      %439 = vst [vmem:[#allocation2 + $0x50] sm:$0xff] %v432
      %440 = vst [vmem:[#allocation2 + $0x58] sm:$0xff] %v434
      %441 = vst.msk [vmem:[#allocation2 + $0x60] sm:$0xf] %vm356, %v435
      %442 = vrot.lane.b32.xlu0 %v328, 126
      %v443 = vpop.permute.xlu0 %442
      %444 = vrot.lane.b32.xlu0 %v329, 126
      %v445 = vpop.permute.xlu0 %444
      %446 = vrot.lane.b32.xlu0 %v330, 126
      %v447 = vpop.permute.xlu0 %446
      %v448 = vrot.slane %v443, 4
      %v449 = vrot.slane %v445, 4
      %v450 = vrot.slane %v447, 4
      %v451 = vsel %vm344, %v448, %v449
      %vm452 = vcmask 1031168
      %v453 = vsel %vm452, %v443, %v451
      %v454 = vsel %vm344, %v449, %v450
      %v455 = vsel %vm452, %v445, %v454
      %459 = vst [vmem:[#allocation2 + $0x64] sm:$0xff] %v453
      %460 = vst [vmem:[#allocation2 + $0x6c] sm:$0xff] %v455
      %461 = vst.msk [vmem:[#allocation2 + $0x74] sm:$0xf] %vm356, %v447
      %462 = vrot.lane.b32.xlu0 %v328, 117
      %v463 = vpop.permute.xlu0 %462
      %464 = vrot.lane.b32.xlu0 %v329, 117
      %v465 = vpop.permute.xlu0 %464
      %466 = vrot.lane.b32.xlu0 %v330, 117
      %v467 = vpop.permute.xlu0 %466
      %v468 = vrot.slane %v463, 4
      %v469 = vrot.slane %v465, 4
      %v470 = vrot.slane %v467, 4
      %v471 = vsel %vm344, %v468, %v469
      %vm472 = vcmask 957440
      %v473 = vsel %vm472, %v463, %v471
      %v474 = vsel %vm344, %v469, %v470
      %v475 = vsel %vm472, %v465, %v474
      %479 = vst [vmem:[#allocation2 + $0x78] sm:$0xff] %v473
      %480 = vst [vmem:[#allocation2 + $0x80] sm:$0xff] %v475
      %481 = vst.msk [vmem:[#allocation2 + $0x88] sm:$0xf] %vm356, %v467
      %482 = vrot.lane.b32.xlu0 %v328, 108
      %v483 = vpop.permute.xlu0 %482
      %484 = vrot.lane.b32.xlu0 %v329, 108
      %v485 = vpop.permute.xlu0 %484
      %486 = vrot.lane.b32.xlu0 %v330, 108
      %v487 = vpop.permute.xlu0 %486
      %v488 = vrot.slane %v483, 4
      %v489 = vrot.slane %v485, 4
      %v490 = vrot.slane %v487, 4
      %v491 = vsel %vm344, %v488, %v489
      %vm492 = vcmask 883712
      %v493 = vsel %vm492, %v483, %v491
      %v494 = vsel %vm344, %v489, %v490
      %v495 = vsel %vm492, %v485, %v494
      %499 = vst [vmem:[#allocation2 + $0x8c] sm:$0xff] %v493
      %500 = vst [vmem:[#allocation2 + $0x94] sm:$0xff] %v495
      %501 = vst.msk [vmem:[#allocation2 + $0x9c] sm:$0xf] %vm356, %v487
      %502 = vrot.lane.b32.xlu0 %v328, 26
      %v503 = vpop.permute.xlu0 %502
      %504 = vrot.lane.b32.xlu0 %v329, 26
      %v505 = vpop.permute.xlu0 %504
      %506 = vrot.lane.b32.xlu0 %v330, 26
      %v507 = vpop.permute.xlu0 %506
      %v508 = vrot.slane %v503, 4
      %v509 = vrot.slane %v505, 4
      %v510 = vrot.slane %v507, 4
      %v511 = vsel %vm344, %v508, %v509
      %vm512 = vcmask 211968
      %v513 = vsel %vm512, %v503, %v511
      %v514 = vsel %vm344, %v509, %v510
      %v515 = vsel %vm512, %v505, %v514
      %v516 = vsel %vm512, %v507, %v510
      %520 = vst [vmem:[#allocation2 + $0xa0] sm:$0xff] %v513
      %521 = vst [vmem:[#allocation2 + $0xa8] sm:$0xff] %v515
      %522 = vst.msk [vmem:[#allocation2 + $0xb0] sm:$0xf] %vm356, %v516
      %523 = vrot.lane.b32.xlu0 %v328, 8
      %v524 = vpop.permute.xlu0 %523
      %525 = vrot.lane.b32.xlu0 %v329, 8
      %v526 = vpop.permute.xlu0 %525
      %527 = vrot.lane.b32.xlu0 %v330, 8
      %v528 = vpop.permute.xlu0 %527
      %v529 = vrot.slane %v524, 4
      %v530 = vrot.slane %v526, 4
      %v531 = vrot.slane %v528, 4
      %v532 = vsel %vm344, %v529, %v530
      %vm533 = vcmask 64512
      %v534 = vsel %vm533, %v524, %v532
      %v535 = vsel %vm344, %v530, %v531
      %v536 = vsel %vm533, %v526, %v535
      %v537 = vsel %vm533, %v528, %v531
      %541 = vst [vmem:[#allocation2 + $0xb4] sm:$0xff] %v534
      %542 = vst [vmem:[#allocation2 + $0xbc] sm:$0xff] %v536
      %543 = vst.msk [vmem:[#allocation2 + $0xc4] sm:$0xf] %vm356, %v537
      %545 = vrot.lane.b32.xlu0 %v328, 54
      %v546 = vpop.permute.xlu0 %545
      %547 = vrot.lane.b32.xlu0 %v329, 54
      %v548 = vpop.permute.xlu0 %547
      %549 = vrot.lane.b32.xlu0 %v330, 54
      %v550 = vpop.permute.xlu0 %549
      %551 = vrot.lane.b32.xlu0 %v331, 54
      %v552 = vpop.permute.xlu0 %551
      %v553 = vrot.slane %v546, 4
      %v554 = vrot.slane %v548, 4
      %v555 = vrot.slane %v550, 4
      %v556 = vsel %vm344, %v553, %v554
      %vm557 = vcmask 441344
      %v558 = vsel %vm557, %v556, %v548
      %v559 = vsel %vm344, %v554, %v555
      %v560 = vsel %vm557, %v559, %v550
      %v561 = vsel %vm557, %v555, %v552
      %565 = vst [vmem:[#allocation2 + $0xc8] sm:$0xff] %v558
      %566 = vst [vmem:[#allocation2 + $0xd0] sm:$0xff] %v560
      %567 = vst.msk [vmem:[#allocation2 + $0xd8] sm:$0xf] %vm356, %v561
      %568 = vrot.lane.b32.xlu0 %v328, 45
      %v569 = vpop.permute.xlu0 %568
      %570 = vrot.lane.b32.xlu0 %v329, 45
      %v571 = vpop.permute.xlu0 %570
      %572 = vrot.lane.b32.xlu0 %v330, 45
      %v573 = vpop.permute.xlu0 %572
      %574 = vrot.lane.b32.xlu0 %v331, 45
      %v575 = vpop.permute.xlu0 %574
      %v576 = vrot.slane %v569, 4
      %v577 = vrot.slane %v571, 4
      %v578 = vrot.slane %v573, 4
      %v579 = vsel %vm344, %v576, %v577
      %vm580 = vcmask 367616
      %v581 = vsel %vm580, %v579, %v571
      %v582 = vsel %vm344, %v577, %v578
      %v583 = vsel %vm580, %v582, %v573
      %v584 = vsel %vm580, %v578, %v575
      %588 = vst [vmem:[#allocation2 + $0xdc] sm:$0xff] %v581
      %589 = vst [vmem:[#allocation2 + $0xe4] sm:$0xff] %v583
      %590 = vst.msk [vmem:[#allocation2 + $0xec] sm:$0xf] %vm356, %v584
      %591 = vrot.lane.b32.xlu0 %v328, 36
      %v592 = vpop.permute.xlu0 %591
      %593 = vrot.lane.b32.xlu0 %v329, 36
      %v594 = vpop.permute.xlu0 %593
      %595 = vrot.lane.b32.xlu0 %v330, 36
      %v596 = vpop.permute.xlu0 %595
      %597 = vrot.lane.b32.xlu0 %v331, 36
      %v598 = vpop.permute.xlu0 %597
      %v599 = vrot.slane %v592, 4
      %v600 = vrot.slane %v594, 4
      %v601 = vrot.slane %v596, 4
      %v602 = vsel %vm344, %v599, %v600
      %vm603 = vcmask 293888
      %v604 = vsel %vm603, %v602, %v594
      %v605 = vsel %vm344, %v600, %v601
      %v606 = vsel %vm603, %v605, %v596
      %v607 = vsel %vm603, %v601, %v598
      %611 = vst [vmem:[#allocation2 + $0xf0] sm:$0xff] %v604
      %612 = vst [vmem:[#allocation2 + $0xf8] sm:$0xff] %v606
      %613 = vst.msk [vmem:[#allocation2 + $0x100] sm:$0xf] %vm356, %v607
      %614 = vst [vmem:[#allocation2 + $0x104] sm:$0xff] %v328
      %615 = vst [vmem:[#allocation2 + $0x10c] sm:$0xff] %v329
      %616 = vst.msk [vmem:[#allocation2 + $0x114] sm:$0xf] %vm356, %v330
      %617 = vrot.lane.b32.xlu0 %v328, 106
      %v618 = vpop.permute.xlu0 %617
      %619 = vrot.lane.b32.xlu0 %v329, 106
      %v620 = vpop.permute.xlu0 %619
      %621 = vrot.lane.b32.xlu0 %v330, 106
      %v622 = vpop.permute.xlu0 %621
      %v623 = vrot.slane %v618, 4
      %v624 = vrot.slane %v620, 4
      %v625 = vrot.slane %v622, 4
      %v626 = vsel %vm344, %v623, %v624
      %vm627 = vcmask 867328
      %v628 = vsel %vm627, %v618, %v626
      %v629 = vsel %vm344, %v624, %v625
      %v630 = vsel %vm627, %v620, %v629
      %634 = vst [vmem:[#allocation2 + $0x118] sm:$0xff] %v628
      %635 = vst [vmem:[#allocation2 + $0x120] sm:$0xff] %v630
      %636 = vst.msk [vmem:[#allocation2 + $0x128] sm:$0xf] %vm356, %v622
      %637 = vrot.lane.b32.xlu0 %v328, 28
      %v638 = vpop.permute.xlu0 %637
      %639 = vrot.lane.b32.xlu0 %v329, 28
      %v640 = vpop.permute.xlu0 %639
      %641 = vrot.lane.b32.xlu0 %v330, 28
      %v642 = vpop.permute.xlu0 %641
      %v643 = vrot.slane %v638, 4
      %v644 = vrot.slane %v640, 4
      %v645 = vrot.slane %v642, 4
      %v646 = vsel %vm344, %v643, %v644
      %vm647 = vcmask 228352
      %v648 = vsel %vm647, %v638, %v646
      %v649 = vsel %vm344, %v644, %v645
      %v650 = vsel %vm647, %v640, %v649
      %v651 = vsel %vm647, %v642, %v645
      %655 = vst [vmem:[#allocation2 + $0x12c] sm:$0xff] %v648
      %656 = vst [vmem:[#allocation2 + $0x134] sm:$0xff] %v650
      %657 = vst.msk [vmem:[#allocation2 + $0x13c] sm:$0xf] %vm356, %v651
      %658 = vrot.lane.b32.xlu0 %v328, 6
      %v659 = vpop.permute.xlu0 %658
      %660 = vrot.lane.b32.xlu0 %v329, 6
      %v661 = vpop.permute.xlu0 %660
      %662 = vrot.lane.b32.xlu0 %v330, 6
      %v663 = vpop.permute.xlu0 %662
      %v664 = vrot.slane %v659, 4
      %v665 = vrot.slane %v661, 4
      %v666 = vrot.slane %v663, 4
      %v667 = vsel %vm344, %v664, %v665
      %vm668 = vcmask 48128
      %v669 = vsel %vm668, %v659, %v667
      %v670 = vsel %vm344, %v665, %v666
      %v671 = vsel %vm668, %v661, %v670
      %v672 = vsel %vm668, %v663, %v666
      %676 = vst [vmem:[#allocation2 + $0x140] sm:$0xff] %v669
      %677 = vst [vmem:[#allocation2 + $0x148] sm:$0xff] %v671
      %678 = vst.msk [vmem:[#allocation2 + $0x150] sm:$0xf] %vm356, %v672
      %679 = vrot.lane.b32.xlu0 %v328, 56
      %v680 = vpop.permute.xlu0 %679
      %681 = vrot.lane.b32.xlu0 %v329, 56
      %v682 = vpop.permute.xlu0 %681
      %683 = vrot.lane.b32.xlu0 %v330, 56
      %v684 = vpop.permute.xlu0 %683
      %685 = vrot.lane.b32.xlu0 %v331, 56
      %v686 = vpop.permute.xlu0 %685
      %v687 = vrot.slane %v680, 4
      %v688 = vrot.slane %v682, 4
      %v689 = vrot.slane %v684, 4
      %v690 = vsel %vm344, %v687, %v688
      %vm691 = vcmask 457728
      %v692 = vsel %vm691, %v690, %v682
      %v693 = vsel %vm344, %v688, %v689
      %v694 = vsel %vm691, %v693, %v684
      %v695 = vsel %vm691, %v689, %v686
      %699 = vst [vmem:[#allocation2 + $0x154] sm:$0xff] %v692
      %700 = vst [vmem:[#allocation2 + $0x15c] sm:$0xff] %v694
      %701 = vst.msk [vmem:[#allocation2 + $0x164] sm:$0xf] %vm356, %v695
      %702 = vrot.lane.b32.xlu0 %v328, 34
      %v703 = vpop.permute.xlu0 %702
      %704 = vrot.lane.b32.xlu0 %v329, 34
      %v705 = vpop.permute.xlu0 %704
      %706 = vrot.lane.b32.xlu0 %v330, 34
      %v707 = vpop.permute.xlu0 %706
      %708 = vrot.lane.b32.xlu0 %v331, 34
      %v709 = vpop.permute.xlu0 %708
      %v710 = vrot.slane %v703, 4
      %v711 = vrot.slane %v705, 4
      %v712 = vrot.slane %v707, 4
      %v713 = vsel %vm344, %v710, %v711
      %vm714 = vcmask 277504
      %v715 = vsel %vm714, %v713, %v705
      %v716 = vsel %vm344, %v711, %v712
      %v717 = vsel %vm714, %v716, %v707
      %v718 = vsel %vm714, %v712, %v709
      %722 = vst [vmem:[#allocation2 + $0x168] sm:$0xff] %v715
      %723 = vst [vmem:[#allocation2 + $0x170] sm:$0xff] %v717
      %724 = vst.msk [vmem:[#allocation2 + $0x178] sm:$0xf] %vm356, %v718
      %v725 = vld [vmem:[%s1] sm:$0xff]
      %v726 = vld [vmem:[#allocation2] sm:$0xff]
      %v727 = vld [vmem:[#allocation2 + $0x8] sm:$0xff]
      %v728 = vld [vmem:[#allocation2 + $0x10] sm:$0xf]
      %v729 = vld [vmem:[#allocation2 + $0x14] sm:$0xff]
      %v730 = vld [vmem:[#allocation2 + $0x1c] sm:$0xff]
      %v731 = vld [vmem:[#allocation2 + $0x24] sm:$0xf]
      %v732 = vld [vmem:[#allocation2 + $0x28] sm:$0xff]
      %v733 = vld [vmem:[#allocation2 + $0x30] sm:$0xff]
      %v734 = vld [vmem:[#allocation2 + $0x38] sm:$0xf]
      %v735 = vld [vmem:[#allocation2 + $0x3c] sm:$0xff]
      %v736 = vld [vmem:[#allocation2 + $0x44] sm:$0xff]
      %v737 = vld [vmem:[#allocation2 + $0x4c] sm:$0xf]
      %v738 = vld [vmem:[#allocation2 + $0x50] sm:$0xff]
      %v739 = vld [vmem:[#allocation2 + $0x58] sm:$0xff]
      %v740 = vld [vmem:[#allocation2 + $0x60] sm:$0xf]
      %v741 = vld [vmem:[#allocation2 + $0x64] sm:$0xff]
      %v742 = vld [vmem:[#allocation2 + $0x6c] sm:$0xff]
      %v743 = vld [vmem:[#allocation2 + $0x74] sm:$0xf]
      %v744 = vld [vmem:[#allocation2 + $0x78] sm:$0xff]
      %v745 = vld [vmem:[#allocation2 + $0x80] sm:$0xff]
      %v746 = vld [vmem:[#allocation2 + $0x88] sm:$0xf]
      %v747 = vld [vmem:[#allocation2 + $0x8c] sm:$0xff]
      %v748 = vld [vmem:[#allocation2 + $0x94] sm:$0xff]
      %v749 = vld [vmem:[#allocation2 + $0x9c] sm:$0xf]
      %v750 = vld [vmem:[#allocation2 + $0xa0] sm:$0xff]
      %v751 = vld [vmem:[#allocation2 + $0xa8] sm:$0xff]
      %v752 = vld [vmem:[#allocation2 + $0xb0] sm:$0xf]
      %v753 = vld [vmem:[#allocation2 + $0xb4] sm:$0xff]
      %v754 = vld [vmem:[#allocation2 + $0xbc] sm:$0xff]
      %v755 = vld [vmem:[#allocation2 + $0xc4] sm:$0xf]
      %v756 = vld [vmem:[#allocation2 + $0xc8] sm:$0xff]
      %v757 = vld [vmem:[#allocation2 + $0xd0] sm:$0xff]
      %v758 = vld [vmem:[#allocation2 + $0xd8] sm:$0xf]
      %v759 = vld [vmem:[#allocation2 + $0xdc] sm:$0xff]
      %v760 = vld [vmem:[#allocation2 + $0xe4] sm:$0xff]
      %v761 = vld [vmem:[#allocation2 + $0xec] sm:$0xf]
      %v762 = vld [vmem:[#allocation2 + $0xf0] sm:$0xff]
      %v763 = vld [vmem:[#allocation2 + $0xf8] sm:$0xff]
      %v764 = vld [vmem:[#allocation2 + $0x100] sm:$0xf]
      %v765 = vld [vmem:[#allocation2 + $0x104] sm:$0xff]
      %v766 = vld [vmem:[#allocation2 + $0x10c] sm:$0xff]
      %v767 = vld [vmem:[#allocation2 + $0x114] sm:$0xf]
      %v768 = vld [vmem:[#allocation2 + $0x118] sm:$0xff]
      %v769 = vld [vmem:[#allocation2 + $0x120] sm:$0xff]
      %v770 = vld [vmem:[#allocation2 + $0x128] sm:$0xf]
      %v771 = vld [vmem:[#allocation2 + $0x12c] sm:$0xff]
      %v772 = vld [vmem:[#allocation2 + $0x134] sm:$0xff]
      %v773 = vld [vmem:[#allocation2 + $0x13c] sm:$0xf]
      %v774 = vld [vmem:[#allocation2 + $0x140] sm:$0xff]
      %v775 = vld [vmem:[#allocation2 + $0x148] sm:$0xff]
      %v776 = vld [vmem:[#allocation2 + $0x150] sm:$0xf]
      %v777 = vld [vmem:[#allocation2 + $0x154] sm:$0xff]
      %v778 = vld [vmem:[#allocation2 + $0x15c] sm:$0xff]
      %v779 = vld [vmem:[#allocation2 + $0x164] sm:$0xf]
      %v780 = vld [vmem:[#allocation2 + $0x168] sm:$0xff]
      %v781 = vld [vmem:[#allocation2 + $0x170] sm:$0xff]
      %v782 = vld [vmem:[#allocation2 + $0x178] sm:$0xf]
      %v783 = vld [vmem:[%s2] sm:$0xff]
      %785 = vset.pattern.permute.xlu0 0
      %786 = vperm.xlu0 %785, %v783
      %v787 = vpop.permute.xlu0 %786
      %v790 = vunpack.c.l.b16 %v725
      %v791 = vunpack.c.h.b16 %v725
      %v792 = vpack.c.b16 %v790, %v790
      %v793 = vpack.c.b16 %v791, %v791
      %v852 = vunpack.c.l.b16 %v726
      %v853 = vunpack.c.h.b16 %v726
      %v854 = vunpack.c.l.b16 %v727
      %v855 = vunpack.c.h.b16 %v727
      %v856 = vunpack.c.l.b16 %v728
      %v857 = vunpack.c.l.b16 %v729
      %v858 = vunpack.c.h.b16 %v729
      %v859 = vunpack.c.l.b16 %v730
      %v860 = vunpack.c.h.b16 %v730
      %v861 = vunpack.c.l.b16 %v731
      %v862 = vunpack.c.l.b16 %v732
      %v863 = vunpack.c.h.b16 %v732
      %v864 = vunpack.c.l.b16 %v733
      %v865 = vunpack.c.h.b16 %v733
      %v866 = vunpack.c.l.b16 %v734
      %v867 = vunpack.c.l.b16 %v735
      %v868 = vunpack.c.h.b16 %v735
      %v869 = vunpack.c.l.b16 %v736
      %v870 = vunpack.c.h.b16 %v736
      %v871 = vunpack.c.l.b16 %v737
      %v872 = vunpack.c.l.b16 %v738
      %v873 = vunpack.c.h.b16 %v738
      %v874 = vunpack.c.l.b16 %v739
      %v875 = vunpack.c.h.b16 %v739
      %v876 = vunpack.c.l.b16 %v740
      %v877 = vunpack.c.l.b16 %v741
      %v878 = vunpack.c.h.b16 %v741
      %v879 = vunpack.c.l.b16 %v742
      %v880 = vunpack.c.h.b16 %v742
      %v881 = vunpack.c.l.b16 %v743
      %v882 = vunpack.c.l.b16 %v744
      %v883 = vunpack.c.h.b16 %v744
      %v884 = vunpack.c.l.b16 %v745
      %v885 = vunpack.c.h.b16 %v745
      %v886 = vunpack.c.l.b16 %v746
      %v887 = vunpack.c.l.b16 %v747
      %v888 = vunpack.c.h.b16 %v747
      %v889 = vunpack.c.l.b16 %v748
      %v890 = vunpack.c.h.b16 %v748
      %v891 = vunpack.c.l.b16 %v749
      %v892 = vunpack.c.l.b16 %v750
      %v893 = vunpack.c.h.b16 %v750
      %v894 = vunpack.c.l.b16 %v751
      %v895 = vunpack.c.h.b16 %v751
      %v896 = vunpack.c.l.b16 %v752
      %v897 = vunpack.c.l.b16 %v753
      %v898 = vunpack.c.h.b16 %v753
      %v899 = vunpack.c.l.b16 %v754
      %v900 = vunpack.c.h.b16 %v754
      %v901 = vunpack.c.l.b16 %v755
      %v902 = vunpack.c.l.b16 %v756
      %v903 = vunpack.c.h.b16 %v756
      %v904 = vunpack.c.l.b16 %v757
      %v905 = vunpack.c.h.b16 %v757
      %v906 = vunpack.c.l.b16 %v758
      %v907 = vunpack.c.l.b16 %v759
      %v908 = vunpack.c.h.b16 %v759
      %v909 = vunpack.c.l.b16 %v760
      %v910 = vunpack.c.h.b16 %v760
      %v911 = vunpack.c.l.b16 %v761
      %v912 = vunpack.c.l.b16 %v762
      %v913 = vunpack.c.h.b16 %v762
      %v914 = vunpack.c.l.b16 %v763
      %v915 = vunpack.c.h.b16 %v763
      %v916 = vunpack.c.l.b16 %v764
      %v917 = vunpack.c.l.b16 %v765
      %v918 = vunpack.c.h.b16 %v765
      %v919 = vunpack.c.l.b16 %v766
      %v920 = vunpack.c.h.b16 %v766
      %v921 = vunpack.c.l.b16 %v767
      %v922 = vunpack.c.l.b16 %v768
      %v923 = vunpack.c.h.b16 %v768
      %v924 = vunpack.c.l.b16 %v769
      %v925 = vunpack.c.h.b16 %v769
      %v926 = vunpack.c.l.b16 %v770
      %v927 = vunpack.c.l.b16 %v771
      %v928 = vunpack.c.h.b16 %v771
      %v929 = vunpack.c.l.b16 %v772
      %v930 = vunpack.c.h.b16 %v772
      %v931 = vunpack.c.l.b16 %v773
      %v932 = vunpack.c.l.b16 %v774
      %v933 = vunpack.c.h.b16 %v774
      %v934 = vunpack.c.l.b16 %v775
      %v935 = vunpack.c.h.b16 %v775
      %v936 = vunpack.c.l.b16 %v776
      %v937 = vunpack.c.l.b16 %v777
      %v938 = vunpack.c.h.b16 %v777
      %v939 = vunpack.c.l.b16 %v778
      %v940 = vunpack.c.h.b16 %v778
      %v941 = vunpack.c.l.b16 %v779
      %v942 = vunpack.c.l.b16 %v780
      %v943 = vunpack.c.h.b16 %v780
      %v944 = vunpack.c.l.b16 %v781
      %v945 = vunpack.c.h.b16 %v781
      %v946 = vunpack.c.l.b16 %v782
      %v947 = vpack.c.b16 %v857, %v852
      %v948 = vpack.c.b16 %v858, %v853
      %v949 = vpack.c.b16 %v859, %v854
      %v950 = vpack.c.b16 %v860, %v855
      %v951 = vpack.c.b16 %v861, %v856
      %v952 = vpack.c.b16 %v867, %v862
      %v953 = vpack.c.b16 %v868, %v863
      %v954 = vpack.c.b16 %v869, %v864
      %v955 = vpack.c.b16 %v870, %v865
      %v956 = vpack.c.b16 %v871, %v866
      %v957 = vpack.c.b16 %v877, %v872
      %v958 = vpack.c.b16 %v878, %v873
      %v959 = vpack.c.b16 %v879, %v874
      %v960 = vpack.c.b16 %v880, %v875
      %v961 = vpack.c.b16 %v881, %v876
      %v962 = vpack.c.b16 %v887, %v882
      %v963 = vpack.c.b16 %v888, %v883
      %v964 = vpack.c.b16 %v889, %v884
      %v965 = vpack.c.b16 %v890, %v885
      %v966 = vpack.c.b16 %v891, %v886
      %v967 = vpack.c.b16 %v897, %v892
      %v968 = vpack.c.b16 %v898, %v893
      %v969 = vpack.c.b16 %v899, %v894
      %v970 = vpack.c.b16 %v900, %v895
      %v971 = vpack.c.b16 %v901, %v896
      %v972 = vpack.c.b16 %v907, %v902
      %v973 = vpack.c.b16 %v908, %v903
      %v974 = vpack.c.b16 %v909, %v904
      %v975 = vpack.c.b16 %v910, %v905
      %v976 = vpack.c.b16 %v911, %v906
      %v977 = vpack.c.b16 %v917, %v912
      %v978 = vpack.c.b16 %v918, %v913
      %v979 = vpack.c.b16 %v919, %v914
      %v980 = vpack.c.b16 %v920, %v915
      %v981 = vpack.c.b16 %v921, %v916
      %v982 = vpack.c.b16 %v927, %v922
      %v983 = vpack.c.b16 %v928, %v923
      %v984 = vpack.c.b16 %v929, %v924
      %v985 = vpack.c.b16 %v930, %v925
      %v986 = vpack.c.b16 %v931, %v926
      %v987 = vpack.c.b16 %v937, %v932
      %v988 = vpack.c.b16 %v938, %v933
      %v989 = vpack.c.b16 %v939, %v934
      %v990 = vpack.c.b16 %v940, %v935
      %v991 = vpack.c.b16 %v941, %v936
      %v992 = vpack.c.b16 %v942, %v942
      %v993 = vpack.c.b16 %v943, %v943
      %v994 = vpack.c.b16 %v944, %v944
      %v995 = vpack.c.b16 %v945, %v945
      %v996 = vpack.c.b16 %v946, %v946
      %vm1042 = vcmask 195584
      %v1044 = vsel %vm1042, %v793, 0
      %vm1046 = vcmask 1043456
      %v1048 = vsel %vm1046, %v992, 0
      %v1051 = vsel %vm1046, %v993, 0
      %v1054 = vsel %vm1046, %v994, 0
      %v1057 = vsel %vm1046, %v995, 0
      %v1060 = vsel %vm1046, %v996, 0
      %1062 = vmatpush.bf16.msra.mxu0 %v982
      %1063 = vmatpush.bf16.msra.mxu0 %v977
      %1064 = vmatpush.bf16.msra.mxu0 %v972
      %1065 = vmatpush.bf16.msra.mxu0 %v967
      %1066 = vmatpush.bf16.msra.mxu0 %v962
      %1067 = vmatpush.bf16.msra.mxu0 %v957
      %1068 = vmatpush.bf16.msra.mxu0 %v952
      %1069 = vmatpush.bf16.msra.mxu0 %v947
      %1070 = vmatmul.bf16.gmra.mxu0 %v792
      %v1071 = vpop.f32.mrf.mxu0
      %v1072 = vadd.f32 %v787, %v1071
      %v1073 = vpop.f32.mrf.mxu0
      %1074 = vdwg.mxu0
      %1075 = vmatpush.bf16.msra.mxu0 0
      %1076 = vmatpush.bf16.msra.mxu0 0
      %1077 = vmatpush.bf16.msra.mxu0 0
      %1078 = vmatpush.bf16.msra.mxu0 0
      %1079 = vmatpush.bf16.msra.mxu0 0
      %1080 = vmatpush.bf16.msra.mxu0 0
      %1081 = vmatpush.bf16.msra.mxu0 %v1048
      %1082 = vmatpush.bf16.msra.mxu0 %v987
      %1083 = vmatmul.bf16.gmra.mxu0 %v1044
      %v1084 = vpop.f32.mrf.mxu0
      %v1085 = vadd.f32 %v1072, %v1084
      %v1086 = vpop.f32.mrf.mxu0
      %1087 = vdwg.mxu0
      %1088 = vmatpush.bf16.msra.mxu0 %v983
      %1089 = vmatpush.bf16.msra.mxu0 %v978
      %1090 = vmatpush.bf16.msra.mxu0 %v973
      %1091 = vmatpush.bf16.msra.mxu0 %v968
      %1092 = vmatpush.bf16.msra.mxu0 %v963
      %1093 = vmatpush.bf16.msra.mxu0 %v958
      %1094 = vmatpush.bf16.msra.mxu0 %v953
      %1095 = vmatpush.bf16.msra.mxu0 %v948
      %1096 = vmatmul.bf16.gmra.mxu0 %v792
      %v1097 = vpop.f32.mrf.mxu0
      %v1098 = vadd.f32 %v787, %v1097
      %v1099 = vpop.f32.mrf.mxu0
      %1100 = vdwg.mxu0
      %1101 = vmatpush.bf16.msra.mxu0 0
      %1102 = vmatpush.bf16.msra.mxu0 0
      %1103 = vmatpush.bf16.msra.mxu0 0
      %1104 = vmatpush.bf16.msra.mxu0 0
      %1105 = vmatpush.bf16.msra.mxu0 0
      %1106 = vmatpush.bf16.msra.mxu0 0
      %1107 = vmatpush.bf16.msra.mxu0 %v1051
      %1108 = vmatpush.bf16.msra.mxu0 %v988
      %1109 = vmatmul.bf16.gmra.mxu0 %v1044
      %v1110 = vpop.f32.mrf.mxu0
      %v1111 = vadd.f32 %v1098, %v1110
      %v1112 = vpop.f32.mrf.mxu0
      %1113 = vdwg.mxu0
      %1114 = vmatpush.bf16.msra.mxu0 %v984
      %1115 = vmatpush.bf16.msra.mxu0 %v979
      %1116 = vmatpush.bf16.msra.mxu0 %v974
      %1117 = vmatpush.bf16.msra.mxu0 %v969
      %1118 = vmatpush.bf16.msra.mxu0 %v964
      %1119 = vmatpush.bf16.msra.mxu0 %v959
      %1120 = vmatpush.bf16.msra.mxu0 %v954
      %1121 = vmatpush.bf16.msra.mxu0 %v949
      %1122 = vmatmul.bf16.gmra.mxu0 %v792
      %v1123 = vpop.f32.mrf.mxu0
      %v1124 = vadd.f32 %v787, %v1123
      %v1125 = vpop.f32.mrf.mxu0
      %1126 = vdwg.mxu0
      %1127 = vmatpush.bf16.msra.mxu0 0
      %1128 = vmatpush.bf16.msra.mxu0 0
      %1129 = vmatpush.bf16.msra.mxu0 0
      %1130 = vmatpush.bf16.msra.mxu0 0
      %1131 = vmatpush.bf16.msra.mxu0 0
      %1132 = vmatpush.bf16.msra.mxu0 0
      %1133 = vmatpush.bf16.msra.mxu0 %v1054
      %1134 = vmatpush.bf16.msra.mxu0 %v989
      %1135 = vmatmul.bf16.gmra.mxu0 %v1044
      %v1136 = vpop.f32.mrf.mxu0
      %v1137 = vadd.f32 %v1124, %v1136
      %v1138 = vpop.f32.mrf.mxu0
      %1139 = vdwg.mxu0
      %1140 = vmatpush.bf16.msra.mxu0 %v985
      %1141 = vmatpush.bf16.msra.mxu0 %v980
      %1142 = vmatpush.bf16.msra.mxu0 %v975
      %1143 = vmatpush.bf16.msra.mxu0 %v970
      %1144 = vmatpush.bf16.msra.mxu0 %v965
      %1145 = vmatpush.bf16.msra.mxu0 %v960
      %1146 = vmatpush.bf16.msra.mxu0 %v955
      %1147 = vmatpush.bf16.msra.mxu0 %v950
      %1148 = vmatmul.bf16.gmra.mxu0 %v792
      %v1149 = vpop.f32.mrf.mxu0
      %v1150 = vadd.f32 %v787, %v1149
      %v1151 = vpop.f32.mrf.mxu0
      %1152 = vdwg.mxu0
      %1153 = vmatpush.bf16.msra.mxu0 0
      %1154 = vmatpush.bf16.msra.mxu0 0
      %1155 = vmatpush.bf16.msra.mxu0 0
      %1156 = vmatpush.bf16.msra.mxu0 0
      %1157 = vmatpush.bf16.msra.mxu0 0
      %1158 = vmatpush.bf16.msra.mxu0 0
      %1159 = vmatpush.bf16.msra.mxu0 %v1057
      %1160 = vmatpush.bf16.msra.mxu0 %v990
      %1161 = vmatmul.bf16.gmra.mxu0 %v1044
      %v1162 = vpop.f32.mrf.mxu0
      %v1163 = vadd.f32 %v1150, %v1162
      %v1164 = vpop.f32.mrf.mxu0
      %1165 = vdwg.mxu0
      %1166 = vmatpush.bf16.msra.mxu0 %v986
      %1167 = vmatpush.bf16.msra.mxu0 %v981
      %1168 = vmatpush.bf16.msra.mxu0 %v976
      %1169 = vmatpush.bf16.msra.mxu0 %v971
      %1170 = vmatpush.bf16.msra.mxu0 %v966
      %1171 = vmatpush.bf16.msra.mxu0 %v961
      %1172 = vmatpush.bf16.msra.mxu0 %v956
      %1173 = vmatpush.bf16.msra.mxu0 %v951
      %1174 = vmatmul.bf16.gmra.mxu0 %v792
      %v1175 = vpop.f32.mrf.mxu0
      %v1176 = vadd.f32 %v787, %v1175
      %v1177 = vpop.f32.mrf.mxu0
      %1178 = vdwg.mxu0
      %1179 = vmatpush.bf16.msra.mxu0 0
      %1180 = vmatpush.bf16.msra.mxu0 0
      %1181 = vmatpush.bf16.msra.mxu0 0
      %1182 = vmatpush.bf16.msra.mxu0 0
      %1183 = vmatpush.bf16.msra.mxu0 0
      %1184 = vmatpush.bf16.msra.mxu0 0
      %1185 = vmatpush.bf16.msra.mxu0 %v1060
      %1186 = vmatpush.bf16.msra.mxu0 %v991
      %1187 = vmatmul.bf16.gmra.mxu0 %v1044
      %v1188 = vpop.f32.mrf.mxu0
      %v1189 = vadd.f32 %v1176, %v1188
      %v1190 = vpop.f32.mrf.mxu0
      %1191 = vdwg.mxu0
      %v1192 = vmax.f32 %v1085, 0.0
      %v1193 = vmax.f32 %v1111, 0.0
      %v1194 = vmax.f32 %v1137, 0.0
      %v1195 = vmax.f32 %v1163, 0.0
      %v1196 = vmax.f32 %v1189, 0.0
      %v1197 = vld [vmem:[%s3] sm:$0xff]
      %v1198 = vld [vmem:[%s4] sm:$0xff]
      %1200 = vset.pattern.permute.xlu0 0
      %1201 = vperm.xlu0 %1200, %v1198
      %v1202 = vpop.permute.xlu0 %1201
      %vm1204 = vcmask 64512
      %v1206 = vsel %vm1204, %v1197, 0
      %1208 = vmatpush.msra.mxu0 0.0
      %1209 = vmatpush.msra.mxu0 0.0
      %1210 = vmatpush.msra.mxu0 0.0
      %1211 = vmatpush.msra.mxu0 0.0
      %1212 = vmatpush.msra.mxu0 0.0
      %1213 = vmatpush.msra.mxu0 0.0
      %1214 = vmatpush.msra.mxu0 0.0
      %1215 = vmatpush.msra.mxu0 0.0
      %1216 = vmatpush.msra.mxu0 0.0
      %1217 = vmatpush.msra.mxu0 0.0
      %1218 = vmatpush.msra.mxu0 0.0
      %1219 = vmatpush.msra.mxu0 0.0
      %1220 = vmatpush.msra.mxu0 0.0
      %1221 = vmatpush.msra.mxu0 0.0
      %1222 = vmatpush.msra.mxu0 0.0
      %1223 = vmatpush.msra.mxu0 %v1192
      %1224 = vmatmul.f32.gmra.mxu0 %v1206
      %v1225 = vpop.f32.mrf.mxu0
      %v1226 = vadd.f32 %v1202, %v1225
      %1227 = vdwg.mxu0
      %1228 = vmatpush.msra.mxu0 0.0
      %1229 = vmatpush.msra.mxu0 0.0
      %1230 = vmatpush.msra.mxu0 0.0
      %1231 = vmatpush.msra.mxu0 0.0
      %1232 = vmatpush.msra.mxu0 0.0
      %1233 = vmatpush.msra.mxu0 0.0
      %1234 = vmatpush.msra.mxu0 0.0
      %1235 = vmatpush.msra.mxu0 0.0
      %1236 = vmatpush.msra.mxu0 0.0
      %1237 = vmatpush.msra.mxu0 0.0
      %1238 = vmatpush.msra.mxu0 0.0
      %1239 = vmatpush.msra.mxu0 0.0
      %1240 = vmatpush.msra.mxu0 0.0
      %1241 = vmatpush.msra.mxu0 0.0
      %1242 = vmatpush.msra.mxu0 0.0
      %1243 = vmatpush.msra.mxu0 %v1193
      %1244 = vmatmul.f32.gmra.mxu0 %v1206
      %v1245 = vpop.f32.mrf.mxu0
      %v1246 = vadd.f32 %v1202, %v1245
      %1247 = vdwg.mxu0
      %1248 = vmatpush.msra.mxu0 0.0
      %1249 = vmatpush.msra.mxu0 0.0
      %1250 = vmatpush.msra.mxu0 0.0
      %1251 = vmatpush.msra.mxu0 0.0
      %1252 = vmatpush.msra.mxu0 0.0
      %1253 = vmatpush.msra.mxu0 0.0
      %1254 = vmatpush.msra.mxu0 0.0
      %1255 = vmatpush.msra.mxu0 0.0
      %1256 = vmatpush.msra.mxu0 0.0
      %1257 = vmatpush.msra.mxu0 0.0
      %1258 = vmatpush.msra.mxu0 0.0
      %1259 = vmatpush.msra.mxu0 0.0
      %1260 = vmatpush.msra.mxu0 0.0
      %1261 = vmatpush.msra.mxu0 0.0
      %1262 = vmatpush.msra.mxu0 0.0
      %1263 = vmatpush.msra.mxu0 %v1194
      %1264 = vmatmul.f32.gmra.mxu0 %v1206
      %v1265 = vpop.f32.mrf.mxu0
      %v1266 = vadd.f32 %v1202, %v1265
      %1267 = vdwg.mxu0
      %1268 = vmatpush.msra.mxu0 0.0
      %1269 = vmatpush.msra.mxu0 0.0
      %1270 = vmatpush.msra.mxu0 0.0
      %1271 = vmatpush.msra.mxu0 0.0
      %1272 = vmatpush.msra.mxu0 0.0
      %1273 = vmatpush.msra.mxu0 0.0
      %1274 = vmatpush.msra.mxu0 0.0
      %1275 = vmatpush.msra.mxu0 0.0
      %1276 = vmatpush.msra.mxu0 0.0
      %1277 = vmatpush.msra.mxu0 0.0
      %1278 = vmatpush.msra.mxu0 0.0
      %1279 = vmatpush.msra.mxu0 0.0
      %1280 = vmatpush.msra.mxu0 0.0
      %1281 = vmatpush.msra.mxu0 0.0
      %1282 = vmatpush.msra.mxu0 0.0
      %1283 = vmatpush.msra.mxu0 %v1195
      %1284 = vmatmul.f32.gmra.mxu0 %v1206
      %v1285 = vpop.f32.mrf.mxu0
      %v1286 = vadd.f32 %v1202, %v1285
      %1287 = vdwg.mxu0
      %1288 = vmatpush.msra.mxu0 0.0
      %1289 = vmatpush.msra.mxu0 0.0
      %1290 = vmatpush.msra.mxu0 0.0
      %1291 = vmatpush.msra.mxu0 0.0
      %1292 = vmatpush.msra.mxu0 0.0
      %1293 = vmatpush.msra.mxu0 0.0
      %1294 = vmatpush.msra.mxu0 0.0
      %1295 = vmatpush.msra.mxu0 0.0
      %1296 = vmatpush.msra.mxu0 0.0
      %1297 = vmatpush.msra.mxu0 0.0
      %1298 = vmatpush.msra.mxu0 0.0
      %1299 = vmatpush.msra.mxu0 0.0
      %1300 = vmatpush.msra.mxu0 0.0
      %1301 = vmatpush.msra.mxu0 0.0
      %1302 = vmatpush.msra.mxu0 0.0
      %1303 = vmatpush.msra.mxu0 %v1196
      %1304 = vmatmul.f32.gmra.mxu0 %v1206
      %v1305 = vpop.f32.mrf.mxu0
      %v1306 = vadd.f32 %v1202, %v1305
      %1307 = vdwg.mxu0
      %v1308 = vld [vmem:[%s5] sm:$0x1f]
      %v1310 = vperm.slane %v1308, 0
      %v1311 = vperm.slane %v1308, 1
      %v1312 = vperm.slane %v1308, 2
      %v1313 = vperm.slane %v1308, 3
      %v1314 = vperm.slane %v1308, 4
      %v1320 = vmul.f32 %v1226, %v1310
      %v1321 = vmul.f32 %v1246, %v1311
      %v1322 = vmul.f32 %v1266, %v1312
      %v1323 = vmul.f32 %v1286, %v1313
      %v1324 = vmul.f32 %v1306, %v1314
      %v1325 = vadd.f32 %v1320, %v1321
      %v1326 = vadd.f32 %v1325, %v1322
      %v1327 = vadd.f32 %v1326, %v1323
      %vm1328 = vcmask 719872
      %v1329 = vsel %vm1328, %v1324, 0.0
      %v1330 = vadd.f32 %v1327, %v1329
      %1331 = vadd.xlane.f32.xlu0 %v1330
      %v1332 = vpop.xlane.xlu0 %1331
      %vm1333 = vcmask 7168
      %1334 = vst.msk [vmem:[%s322] sm:$0xff] %vm1333, %v1332
      %v1335 = vmul.f32 %v1320, %v1226
      %v1336 = vmul.f32 %v1321, %v1246
      %v1337 = vmul.f32 %v1322, %v1266
      %v1338 = vmul.f32 %v1323, %v1286
      %v1339 = vmul.f32 %v1324, %v1306
      %v1340 = vadd.f32 %v1335, %v1336
      %v1341 = vadd.f32 %v1340, %v1337
      %v1342 = vadd.f32 %v1341, %v1338
      %v1343 = vsel %vm1328, %v1339, 0.0
      %v1344 = vadd.f32 %v1342, %v1343
      %1345 = vadd.xlane.f32.xlu0 %v1344
      %v1346 = vpop.xlane.xlu0 %1345
      %1347 = vst.msk [vmem:[%s326] sm:$0xff] %vm1333, %v1346
      %v1348 = vpack.c.bf16 %v1246, %v1226
      %v1349 = vpack.c.bf16 %v1286, %v1266
      %1351 = vrot.lane.b32.xlu0 %v1348, 17
      %v1352 = vpop.permute.xlu0 %1351
      %vm1354 = vcmask 60416
      %1355 = vst.msk [vmem:[%s318] sm:$0xf] %vm1354, %v1352
      %1356 = vrot.lane.b32.xlu0 %v1348, 15
      %v1357 = vpop.permute.xlu0 %1356
      %v1358 = vrot.slane %v1357, 4
      %vm1359 = vcmask 121856
      %v1360 = vsel %vm1359, %v1357, %v1358
      %vm1362 = vcmask 126016
      %1363 = vst.msk [vmem:[%s318] sm:$0xf] %vm1362, %v1360
      %1364 = vrot.lane.b32.xlu0 %v1348, 125
      %v1365 = vpop.permute.xlu0 %1364
      %v1366 = vrot.slane %v1365, 4
      %1367 = vrot.lane.b32.xlu0 %v1366, 16
      %v1368 = vpop.permute.xlu0 %1367
      %vm1370 = vcmask 191616
      %1371 = vst.msk [vmem:[%s318] sm:$0xf] %vm1370, %v1368
      %1372 = vrot.lane.b32.xlu0 %v1348, 115
      %v1373 = vpop.permute.xlu0 %1372
      %v1374 = vrot.slane %v1373, 4
      %1375 = vrot.lane.b32.xlu0 %v1374, 24
      %v1376 = vpop.permute.xlu0 %1375
      %vm1378 = vcmask 257216
      %1379 = vst.msk [vmem:[%s318] sm:$0xf] %vm1378, %v1376
      %1380 = vrot.lane.b32.xlu0 %v1348, 105
      %v1381 = vpop.permute.xlu0 %1380
      %v1382 = vrot.slane %v1381, 4
      %1383 = vrot.lane.b32.xlu0 %v1382, 32
      %v1384 = vpop.permute.xlu0 %1383
      %vm1386 = vcmask 322816
      %1387 = vst.msk [vmem:[%s318] sm:$0xf] %vm1386, %v1384
      %1388 = vrot.lane.b32.xlu0 %v1348, 95
      %v1389 = vpop.permute.xlu0 %1388
      %v1390 = vrot.slane %v1389, 4
      %1391 = vrot.lane.b32.xlu0 %v1390, 40
      %v1392 = vpop.permute.xlu0 %1391
      %vm1394 = vcmask 388416
      %1395 = vst.msk [vmem:[%s318] sm:$0xf] %vm1394, %v1392
      %1396 = vrot.lane.b32.xlu0 %v1348, 85
      %v1397 = vpop.permute.xlu0 %1396
      %v1398 = vrot.slane %v1397, 4
      %1399 = vrot.lane.b32.xlu0 %v1398, 48
      %v1400 = vpop.permute.xlu0 %1399
      %vm1402 = vcmask 454016
      %1403 = vst.msk [vmem:[%s318] sm:$0xf] %vm1402, %v1400
      %1404 = vrot.lane.b32.xlu0 %v1348, 75
      %v1405 = vpop.permute.xlu0 %1404
      %v1406 = vrot.slane %v1405, 4
      %1407 = vrot.lane.b32.xlu0 %v1406, 56
      %v1408 = vpop.permute.xlu0 %1407
      %vm1410 = vcmask 519616
      %1411 = vst.msk [vmem:[%s318] sm:$0xf] %vm1410, %v1408
      %1412 = vrot.lane.b32.xlu0 %v1348, 45
      %v1413 = vpop.permute.xlu0 %1412
      %v1414 = vrot.slane %v1413, 4
      %1415 = vrot.lane.b32.xlu0 %v1414, 64
      %v1416 = vpop.permute.xlu0 %1415
      %vm1418 = vcmask 585216
      %1419 = vst.msk [vmem:[%s318] sm:$0xf] %vm1418, %v1416
      %1420 = vrot.lane.b32.xlu0 %v1348, 35
      %v1421 = vpop.permute.xlu0 %1420
      %v1422 = vrot.slane %v1421, 4
      %1423 = vrot.lane.b32.xlu0 %v1422, 72
      %v1424 = vpop.permute.xlu0 %1423
      %vm1426 = vcmask 650816
      %1427 = vst.msk [vmem:[%s318] sm:$0xf] %vm1426, %v1424
      %1428 = vrot.lane.b32.xlu0 %v1348, 25
      %v1429 = vpop.permute.xlu0 %1428
      %v1430 = vrot.slane %v1429, 4
      %1431 = vrot.lane.b32.xlu0 %v1430, 80
      %v1432 = vpop.permute.xlu0 %1431
      %vm1434 = vcmask 716416
      %1435 = vst.msk [vmem:[%s318] sm:$0xf] %vm1434, %v1432
      %1436 = vrot.lane.b32.xlu0 %v1358, 88
      %v1437 = vpop.permute.xlu0 %1436
      %vm1439 = vcmask 782016
      %1440 = vst.msk [vmem:[%s318] sm:$0xf] %vm1439, %v1437
      %1442 = vrot.lane.b32.xlu0 %v1348, 5
      %v1443 = vpop.permute.xlu0 %1442
      %1444 = vrot.lane.b32.xlu0 %v1349, 5
      %v1445 = vpop.permute.xlu0 %1444
      %v1446 = vrot.slane %v1443, 4
      %vm1447 = vcmask 39936
      %v1448 = vsel %vm1447, %v1446, %v1445
      %1449 = vrot.lane.b32.xlu0 %v1448, 96
      %v1450 = vpop.permute.xlu0 %1449
      %vm1452 = vcmask 847616
      %1453 = vst.msk [vmem:[%s318] sm:$0xf] %vm1452, %v1450
      %1454 = vrot.lane.b32.xlu0 %v1349, 99
      %v1455 = vpop.permute.xlu0 %1454
      %vm1457 = vcmask 913216
      %1458 = vst.msk [vmem:[%s318] sm:$0xf] %vm1457, %v1455
      %1459 = vrot.lane.b32.xlu0 %v1349, 97
      %v1460 = vpop.permute.xlu0 %1459
      %vm1462 = vcmask 978816
      %1463 = vst.msk [vmem:[%s318] sm:$0xf] %vm1462, %v1460
      %1464 = vrot.lane.b32.xlu0 %v1349, 95
      %v1465 = vpop.permute.xlu0 %1464
      %vm1467 = vcmask 1044416
      %1468 = vst.msk [vmem:[%s318] sm:$0xf] %vm1467, %v1465
      %1469 = vrot.lane.b32.xlu0 %v1349, 73
      %v1470 = vpop.permute.xlu0 %1469
      %1472 = vst.msk [vmem:[%s318 + $0x4] sm:$0xf] %vm1354, %v1470
      %1473 = vrot.lane.b32.xlu0 %v1349, 71
      %v1474 = vpop.permute.xlu0 %1473
      %1476 = vst.msk [vmem:[%s318 + $0x4] sm:$0xf] %vm1362, %v1474
      %1477 = vrot.lane.b32.xlu0 %v1349, 69
      %v1478 = vpop.permute.xlu0 %1477
      %1480 = vst.msk [vmem:[%s318 + $0x4] sm:$0xf] %vm1370, %v1478
      %1481 = vrot.lane.b32.xlu0 %v1349, 67
      %v1482 = vpop.permute.xlu0 %1481
      %1484 = vst.msk [vmem:[%s318 + $0x4] sm:$0xf] %vm1378, %v1482
      %1485 = vrot.lane.b32.xlu0 %v1349, 65
      %v1486 = vpop.permute.xlu0 %1485
      %1488 = vst.msk [vmem:[%s318 + $0x4] sm:$0xf] %vm1386, %v1486
      %1489 = vrot.lane.b32.xlu0 %v1349, 63
      %v1490 = vpop.permute.xlu0 %1489
      %1492 = vst.msk [vmem:[%s318 + $0x4] sm:$0xf] %vm1394, %v1490
      %1493 = vrot.lane.b32.xlu0 %v1349, 61
      %v1494 = vpop.permute.xlu0 %1493
      %1496 = vst.msk [vmem:[%s318 + $0x4] sm:$0xf] %vm1402, %v1494
      %1497 = vrot.lane.b32.xlu0 %v1349, 59
      %v1498 = vpop.permute.xlu0 %1497
      %v1499 = vrot.slane %v1498, 4
      %vm1500 = vcmask 482304
      %v1501 = vsel %vm1500, %v1498, %v1499
      %1503 = vst.msk [vmem:[%s318 + $0x4] sm:$0xf] %vm1410, %v1501
      %1504 = vrot.lane.b32.xlu0 %v1349, 101
      %v1505 = vpop.permute.xlu0 %1504
      %v1506 = vrot.slane %v1505, 4
      %1507 = vrot.lane.b32.xlu0 %v1506, 64
      %v1508 = vpop.permute.xlu0 %1507
      %1510 = vst.msk [vmem:[%s318 + $0x4] sm:$0xf] %vm1418, %v1508
      %1511 = vrot.lane.b32.xlu0 %v1349, 91
      %v1512 = vpop.permute.xlu0 %1511
      %v1513 = vrot.slane %v1512, 4
      %1514 = vrot.lane.b32.xlu0 %v1513, 72
      %v1515 = vpop.permute.xlu0 %1514
      %1517 = vst.msk [vmem:[%s318 + $0x4] sm:$0xf] %vm1426, %v1515
      %1518 = vrot.lane.b32.xlu0 %v1349, 81
      %v1519 = vpop.permute.xlu0 %1518
      %v1520 = vrot.slane %v1519, 4
      %1521 = vrot.lane.b32.xlu0 %v1520, 80
      %v1522 = vpop.permute.xlu0 %1521
      %1524 = vst.msk [vmem:[%s318 + $0x4] sm:$0xf] %vm1434, %v1522
      %v1525 = vrot.slane %v1474, 4
      %1526 = vrot.lane.b32.xlu0 %v1525, 88
      %v1527 = vpop.permute.xlu0 %1526
      %1529 = vst.msk [vmem:[%s318 + $0x4] sm:$0xf] %vm1439, %v1527
      %v1530 = vrot.slane %v1494, 4
      %1531 = vrot.lane.b32.xlu0 %v1530, 96
      %v1532 = vpop.permute.xlu0 %1531
      %1534 = vst.msk [vmem:[%s318 + $0x4] sm:$0xf] %vm1452, %v1532
      %1535 = vrot.lane.b32.xlu0 %v1349, 51
      %v1536 = vpop.permute.xlu0 %1535
      %v1537 = vrot.slane %v1536, 4
      %1538 = vrot.lane.b32.xlu0 %v1537, 104
      %v1539 = vpop.permute.xlu0 %1538
      %1541 = vst.msk [vmem:[%s318 + $0x4] sm:$0xf] %vm1457, %v1539
      %1542 = vrot.lane.b32.xlu0 %v1349, 41
      %v1543 = vpop.permute.xlu0 %1542
      %v1544 = vrot.slane %v1543, 4
      %1545 = vrot.lane.b32.xlu0 %v1544, 112
      %v1546 = vpop.permute.xlu0 %1545
      %1548 = vst.msk [vmem:[%s318 + $0x4] sm:$0xf] %vm1462, %v1546
      %1549 = vrot.lane.b32.xlu0 %v1349, 31
      %v1550 = vpop.permute.xlu0 %1549
      %v1551 = vrot.slane %v1550, 4
      %1552 = vrot.lane.b32.xlu0 %v1551, 120
      %v1553 = vpop.permute.xlu0 %1552
      %1555 = vst.msk [vmem:[%s318 + $0x4] sm:$0xf] %vm1467, %v1553
      %p1556 = scmp.lt.s32.totalorder %s20, 1
      %s1557 = scalar_select %p1556, %s20, 1
      %s1558 = smul.addr %s1557, 2
      %s1559 = smul.addr %s1558, 4
      %s1560 = scalar_lea.vmem %s6, %s1559
      %p1561 = scmp.lt.s32.totalorder %s20, 1
      %s1562 = scalar_select %p1561, %s20, 1
      %s1563 = smul.addr %s1562, 8
      %s1564 = scalar_lea.vmem %s7, %s1563
      %p1565 = scmp.lt.s32.totalorder %s20, 1
      %s1566 = scalar_select %p1565, %s20, 1
      %s1567 = smul.addr %s1566, 8
      %s1568 = scalar_lea.vmem %s8, %s1567
      // Predicated region
      $region45: #{stripe_direction_block.2} parent=43 // pred_check
        %p1569 = pneg %p169
      $region46: #{stripe_direction_block.2} parent=43 // pred_check_branch
        %1571 = sbr.rel (%p1569) target = $region48
      $region47: #{stripe_direction_block.2} parent=43 // pred_region
        _
      $region48: #{stripe_direction_block.2} parent=43 // pred_fallthru
        _
      // Predicated region
      $region49: #{stripe_direction_block.2} parent=43 // pred_check
        %p1572 = pneg %p195
      $region50: #{stripe_direction_block.2} parent=43 // pred_check_branch
        %1574 = sbr.rel (%p1572) target = $region52
      $region51: #{stripe_direction_block.2} parent=43 // pred_region
        _
      $region52: #{stripe_direction_block.2} parent=43 // pred_fallthru
        _
      // Predicated region
      $region53: #{stripe_direction_block.2} parent=43 // pred_check
        %p1575 = pneg %p221
      $region54: #{stripe_direction_block.2} parent=43 // pred_check_branch
        %1577 = sbr.rel (%p1575) target = $region56
      $region55: #{stripe_direction_block.2} parent=43 // pred_region
        _
      $region56: #{stripe_direction_block.2} parent=43 // pred_fallthru
        _
    $region44: #{stripe_direction_block.2} parent=5 // pred_fallthru
      _
    %p1578 = scmp.le.s32.totalorder 2, %s15
    // Predicated region
    $region57: #{stripe_direction_block.2} parent=5 // pred_check
      %p1579 = pneg %p1578
    $region58: #{stripe_direction_block.2} parent=5 // pred_check_branch
      %1581 = sbr.rel (%p1579) target = $region60
    $region59: #{stripe_direction_block.2} parent=5 // pred_region
      %s1582 = ssub.s32 %s15, 2
      // Predicated region
      $region61: #{stripe_direction_block.2} parent=59 // pred_check
        %p1583 = pneg %p175
      $region62: #{stripe_direction_block.2} parent=59 // pred_check_branch
        %1585 = sbr.rel (%p1583) target = $region64
      $region63: #{stripe_direction_block.2} parent=59 // pred_region
        %p1586 = scmp.lt.s32.totalorder %s21, 1
        %s1587 = scalar_select %p1586, %s21, 1
        %s1588 = smul.addr %s1587, 2
        %s1589 = smul.addr %s1588, 4
        %s1590 = scalar_lea.vmem %s6, %s1589
      $region64: #{stripe_direction_block.2} parent=59 // pred_fallthru
        _
      // Predicated region
      $region65: #{stripe_direction_block.2} parent=59 // pred_check
        %p1591 = pneg %p201
      $region66: #{stripe_direction_block.2} parent=59 // pred_check_branch
        %1593 = sbr.rel (%p1591) target = $region68
      $region67: #{stripe_direction_block.2} parent=59 // pred_region
        %p1594 = scmp.lt.s32.totalorder %s21, 1
        %s1595 = scalar_select %p1594, %s21, 1
        %s1596 = smul.addr %s1595, 8
        %s1597 = scalar_lea.vmem %s7, %s1596
      $region68: #{stripe_direction_block.2} parent=59 // pred_fallthru
        _
      // Predicated region
      $region69: #{stripe_direction_block.2} parent=59 // pred_check
        %p1598 = pneg %p227
      $region70: #{stripe_direction_block.2} parent=59 // pred_check_branch
        %1600 = sbr.rel (%p1598) target = $region72
      $region71: #{stripe_direction_block.2} parent=59 // pred_region
        %p1601 = scmp.lt.s32.totalorder %s21, 1
        %s1602 = scalar_select %p1601, %s21, 1
        %s1603 = smul.addr %s1602, 8
        %s1604 = scalar_lea.vmem %s8, %s1603
      $region72: #{stripe_direction_block.2} parent=59 // pred_fallthru
        _
    $region60: #{stripe_direction_block.2} parent=5 // pred_fallthru
      _
  $region6: #{stripe_direction_block.2} parent=0 // loop_footer
    %s19 = sadd.s32 1, %s15
  $region7: #{stripe_direction_block.2} parent=0 // loop_footer_branch
    %14 = sbr.rel target = $region3
  $region8: #{stripe_direction_block.2} parent=0 // loop_exit
    _

</llo_original>
